<compile_context>
chip_gen: v7x
topology: tpu7x:2x2x1
jax: 0.10.0
libtpu: 0.0.40
codegen_flags: <defaults>
</compile_context>

<pallas_src>
import functools

import jax
import jax.numpy as jnp
from jax import lax
from jax.experimental import pallas as pl
from jax.experimental.pallas import tpu as pltpu


# -----------------------------------------------------------------------------
# Kernel A: LayerNorm2d + fused q/k/v 1x1-convs + super-token pooling + `sp`
# -----------------------------------------------------------------------------

def _ln_qkv_stoken_kernel(x_ref, g_ref, b_ref, wqkv_ref, aff_ref, wsp_ref,
                          q_ref, k_ref, v_ref, st_ref,
                          num_acc, den_acc, *, eps, qk_dim, num_heads):
    t = pl.program_id(1)

    @pl.when(t == 0)
    def _():
        num_acc[...] = jnp.zeros_like(num_acc)
        den_acc[...] = jnp.zeros_like(den_acc)

    x = x_ref[0].astype(jnp.float32)                      # (C, t_hw)
    g = g_ref[...].astype(jnp.float32)                    # (C, 1)
    b = b_ref[...].astype(jnp.float32)                    # (C, 1)

    # LayerNorm over the channel (sublane) axis.  Two-pass variance
    # E[(x - mean)^2] for better accuracy than E[x^2] - E[x]^2.
    mean = jnp.mean(x, axis=0, keepdims=True)             # (1, t_hw)
    xc = x - mean
    var = jnp.mean(xc * xc, axis=0, keepdims=True)
    xn = xc * lax.rsqrt(var + eps) * g + b                # (C, t_hw) f32

    # One fused MXU matmul for q/k/v: [wq; wk; wv] @ xn.  Operands fed in the
    # model dtype (bf16 fast path on v6e/v7x); accumulation stays f32.
    xn_mm = xn.astype(wqkv_ref.dtype)
    qkv = jnp.dot(wqkv_ref[...], xn_mm,
                  preferred_element_type=jnp.float32)     # (2*qk+C, t_hw)
    q_ref[0] = qkv[:qk_dim].astype(q_ref.dtype)
    k_ref[0] = qkv[qk_dim:2 * qk_dim].astype(k_ref.dtype)
    v_ref[0] = qkv[2 * qk_dim:].astype(v_ref.dtype)

    # Super-token pooling accumulation over the HW reduction axis:
    #   num[m, c] += sum_hw aff[m, hw] * xn[c, hw];  den[m] += sum_hw aff[m, hw]
    aff = aff_ref[0]                                      # (M, t_hw)
    num_acc[...] += lax.dot_general(
        aff.astype(xn_mm.dtype), xn_mm, (((1,), (1,)), ((), ())),
        preferred_element_type=jnp.float32)               # (M, C)
    den_acc[...] += jnp.sum(aff.astype(jnp.float32), axis=1, keepdims=True)

    @pl.when(t == pl.num_programs(1) - 1)
    def _():
        hd = qk_dim // num_heads
        stoken = num_acc[...] * (1.0 / (den_acc[...] + 1e-16))   # (M, C)
        st_mm = stoken.astype(wsp_ref.dtype)
        wsp = wsp_ref[...]                                       # (qk_dim, C)
        # Write super tokens directly in (head, M, hd) layout -> no XLA
        # transpose between kernels.
        for h in range(num_heads):                               # static loop
            w_h = wsp[h * hd:(h + 1) * hd, :]                    # (hd, C)
            sp_h = lax.dot_general(st_mm, w_h, (((1,), (1,)), ((), ())),
                                   preferred_element_type=jnp.float32)
            st_ref[0, h] = sp_h.astype(st_ref.dtype)             # (M, hd)


# -----------------------------------------------------------------------------
# Kernel C1: first attention stage (softmax over HW), online-softmax over
#            HW tiles, producing s_out per (batch, head) in (M, cd) layout.
# -----------------------------------------------------------------------------

def _spatt_stage1_kernel(st_ref, k_ref, v_ref, so_ref,
                         m_sc, l_sc, acc_sc, *, scale):
    t = pl.program_id(2)

    @pl.when(t == 0)
    def _():
        m_sc[...] = jnp.full_like(m_sc, -jnp.inf)
        l_sc[...] = jnp.zeros_like(l_sc)
        acc_sc[...] = jnp.zeros_like(acc_sc)

    st = st_ref[0, 0]                                     # (M, hd), model dtype
    k = k_ref[0]                                          # (hd, t_hw)
    v = v_ref[0]                                          # (cd, t_hw)

    # s_attn^T tile: (M, t_hw), softmax runs over the HW (lane) axis.
    s = jnp.dot(st, k, preferred_element_type=jnp.float32) * scale
    m_prev = m_sc[...]
    m_new = jnp.maximum(m_prev, jnp.max(s, axis=-1, keepdims=True))   # (M, 1)
    alpha = jnp.exp(m_prev - m_new)                                   # (M, 1)
    e = jnp.exp(s - m_new)                                            # (M, t_hw)
    l_sc[...] = alpha * l_sc[...] + jnp.sum(e, axis=-1, keepdims=True)
    acc_sc[...] = alpha * acc_sc[...] + lax.dot_general(
        e.astype(v.dtype), v, (((1,), (1,)), ((), ())),
        preferred_element_type=jnp.float32)                           # (M, cd)
    m_sc[...] = m_new

    @pl.when(t == pl.num_programs(2) - 1)
    def _():
        # Deferred normalization: (M, cd) scaling instead of (M, HW) divides.
        so_ref[0, 0] = (acc_sc[...] * (1.0 / l_sc[...])).astype(so_ref.dtype)


# -----------------------------------------------------------------------------
# Kernel C2: second attention stage (softmax over num_spixels), HW-tiled,
#            normalization deferred to the (cd, t_hw) output.
# -----------------------------------------------------------------------------

def _spatt_stage2_kernel(st_ref, q_ref, so_ref, o_ref, *, scale):
    st = st_ref[0, 0]                                     # (M, hd)
    q = q_ref[0]                                          # (hd, t_hw)
    so = so_ref[0, 0]                                     # (M, cd) == s_out^T

    x_logits = jnp.dot(st, q, preferred_element_type=jnp.float32) * scale
    x_logits = x_logits - jnp.max(x_logits, axis=0, keepdims=True)    # (M, t_hw)
    e2 = jnp.exp(x_logits)
    inv_den = 1.0 / jnp.sum(e2, axis=0, keepdims=True)                # (1, t_hw)

    # out = s_out @ softmax(x_attn) with the per-column normalization folded
    # into the (cd, t_hw) output instead of dividing the (M, t_hw) probs.
    out = lax.dot_general(so, e2.astype(so.dtype), (((0,), (0,)), ((), ())),
                          preferred_element_type=jnp.float32)         # (cd, t_hw)
    o_ref[0] = (out * inv_den).astype(o_ref.dtype)


# -----------------------------------------------------------------------------
# Wrapper
# -----------------------------------------------------------------------------

def _vmem_limit_bytes():
    """Generation-aware scoped-VMEM limit (half the physical VMEM, capped)."""
    cap = 64 * 1024 * 1024                      # v7x worst case fallback
    try:
        info = pltpu.get_tpu_info()
        cap = int(getattr(info, "vmem_capacity_bytes", cap))
    except Exception:
        pass
    return max(16 * 1024 * 1024, min(cap // 2, 96 * 1024 * 1024))


def _pick_hw_tile(hw, cap_cols):
    """Largest multiple-of-128 divisor of hw that is <= cap_cols (else 128);
    full hw when hw is not a multiple of 128 (full-extent block is legal)."""
    if hw % 128 != 0:
        return hw
    best = 128
    t = 128
    while t <= hw:
        if hw % t == 0 and t <= cap_cols:
            best = t
        t += 128
    return best


def sp_inter_att_forward(x, affinity, *, wq, wk, wv, wsp, gamma, beta,
                         num_heads, qk_scale=None, eps=1e-6):
    """x: (B, C, H, W); affinity: (B, num_spixels, H*W) soft assignments."""
    B, C, H, W = x.shape
    HW = H * W
    M = affinity.shape[1]
    qk_dim = wq.shape[0]
    hd = qk_dim // num_heads
    cd = C // num_heads
    scale = qk_scale if qk_scale is not None else hd ** -0.5
    assert qk_dim % num_heads == 0 and C % num_heads == 0
    assert num_heads == 1 or (hd % 8 == 0 and cd % 8 == 0), (
        "per-head dims must be multiples of 8 (TPU sublane tiling)")
    assert affinity.shape == (B, M, HW)

    dt = x.dtype
    isz = jnp.dtype(dt).itemsize
    x_cf = x.reshape(B, C, HW)              # free reshape, stays channels-first
    g2 = gamma.reshape(C, 1)
    b2 = beta.reshape(C, 1)
    wqkv = jnp.concatenate([wq, wk, wv], axis=0)          # (2*qk_dim + C, C)
    out_rows = 2 * qk_dim + C

    vmem_limit = _vmem_limit_bytes()
    tile_budget = int(vmem_limit * 0.7)     # leave headroom under the limit

    # --- Kernel A tile size: actual element sizes + in-kernel f32 temporaries.
    fixed_a = 2 * isz * (out_rows * C + qk_dim * C + 2 * C) + 4 * (M * C + M + 8)
    per_col_a = 2 * isz * (C + M + out_rows) + 4 * (C + out_rows)
    t_hw_a = _pick_hw_tile(HW, max(128, (tile_budget - fixed_a) // per_col_a))
    n_ta = HW // t_hw_a

    q, k, v, st = pl.pallas_call(
        functools.partial(_ln_qkv_stoken_kernel, eps=eps, qk_dim=qk_dim,
                          num_heads=num_heads),
        out_shape=(
            jax.ShapeDtypeStruct((B, qk_dim, HW), dt),              # q
            jax.ShapeDtypeStruct((B, qk_dim, HW), dt),              # k
            jax.ShapeDtypeStruct((B, C, HW), dt),                   # v
            jax.ShapeDtypeStruct((B, num_heads, M, hd), dt),        # super tokens
        ),
        grid_spec=pltpu.PrefetchScalarGridSpec(
            num_scalar_prefetch=0,
            grid=(B, n_ta),
            in_specs=[
                pl.BlockSpec((1, C, t_hw_a), lambda b, t: (b, 0, t)),
                pl.BlockSpec((C, 1), lambda b, t: (0, 0)),
                pl.BlockSpec((C, 1), lambda b, t: (0, 0)),
                pl.BlockSpec((out_rows, C), lambda b, t: (0, 0)),
                pl.BlockSpec((1, M, t_hw_a), lambda b, t: (b, 0, t)),
                pl.BlockSpec((qk_dim, C), lambda b, t: (0, 0)),
            ],
            out_specs=[
                pl.BlockSpec((1, qk_dim, t_hw_a), lambda b, t: (b, 0, t)),
                pl.BlockSpec((1, qk_dim, t_hw_a), lambda b, t: (b, 0, t)),
                pl.BlockSpec((1, C, t_hw_a), lambda b, t: (b, 0, t)),
                pl.BlockSpec((1, num_heads, M, hd), lambda b, t: (b, 0, 0, 0)),
            ],
            scratch_shapes=[
                pltpu.VMEM((M, C), jnp.float32),    # pooling numerator acc
                pltpu.VMEM((M, 1), jnp.float32),    # pooling denominator acc
            ],
        ),
        compiler_params=pltpu.CompilerParams(
            dimension_semantics=("parallel", "arbitrary"),
            vmem_limit_bytes=vmem_limit),
    )(x_cf, g2, b2, wqkv, affinity, wsp)

    # --- Attention tile size (shared by both stages).
    per_col_c = 2 * isz * (hd + cd) + 4 * (3 * M + 2 * cd)
    fixed_c = 2 * isz * (M * hd + M * cd) + 4 * (M * cd + 2 * M + 8)
    t_hw_c = _pick_hw_tile(HW, max(128, (tile_budget - fixed_c) // per_col_c))
    n_tc = HW // t_hw_c

    # --- Kernel C1: first stage (softmax over HW) via online softmax over tiles.
    s_out = pl.pallas_call(
        functools.partial(_spatt_stage1_kernel, scale=scale),
        out_shape=jax.ShapeDtypeStruct((B, num_heads, M, cd), dt),
        grid_spec=pltpu.PrefetchScalarGridSpec(
            num_scalar_prefetch=0,
            grid=(B, num_heads, n_tc),
            in_specs=[
                pl.BlockSpec((1, 1, M, hd), lambda b, h, t: (b, h, 0, 0)),
                pl.BlockSpec((1, hd, t_hw_c), lambda b, h, t: (b, h, t)),
                pl.BlockSpec((1, cd, t_hw_c), lambda b, h, t: (b, h, t)),
            ],
            out_specs=pl.BlockSpec((1, 1, M, cd), lambda b, h, t: (b, h, 0, 0)),
            scratch_shapes=[
                pltpu.VMEM((M, 1), jnp.float32),    # running max
                pltpu.VMEM((M, 1), jnp.float32),    # running sum
                pltpu.VMEM((M, cd), jnp.float32),   # unnormalized v @ exp acc
            ],
        ),
        compiler_params=pltpu.CompilerParams(
            dimension_semantics=("parallel", "parallel", "arbitrary"),
            vmem_limit_bytes=vmem_limit),
    )(st, k, v)

    # --- Kernel C2: second stage (softmax over num_spixels), HW-tiled.
    out = pl.pallas_call(
        functools.partial(_spatt_stage2_kernel, scale=scale),
        out_shape=jax.ShapeDtypeStruct((B, C, HW), dt),
        grid_spec=pltpu.PrefetchScalarGridSpec(
            num_scalar_prefetch=0,
            grid=(B, num_heads, n_tc),
            in_specs=[
                pl.BlockSpec((1, 1, M, hd), lambda b, h, t: (b, h, 0, 0)),
                pl.BlockSpec((1, hd, t_hw_c), lambda b, h, t: (b, h, t)),
                pl.BlockSpec((1, 1, M, cd), lambda b, h, t: (b, h, 0, 0)),
            ],
            out_specs=pl.BlockSpec((1, cd, t_hw_c), lambda b, h, t: (b, h, t)),
        ),
        compiler_params=pltpu.CompilerParams(
            dimension_semantics=("parallel", "parallel", "parallel"),
            vmem_limit_bytes=vmem_limit),
    )(st, q, s_out)

    return out.reshape(B, C, H, W)


# -----------------------------------------------------------------------------
# Pure-JAX reference (mirrors the PyTorch module)
# -----------------------------------------------------------------------------

def _ref_forward(x, affinity, *, wq, wk, wv, wsp, gamma, beta, num_heads,
                 qk_scale=None, eps=1e-6):
    B, C, H, W = x.shape
    HW = H * W
    qk_dim = wq.shape[0]
    hd = qk_dim // num_heads
    cd = C // num_heads
    scale = qk_scale if qk_scale is not None else hd ** -0.5

    # LayerNorm2d
    x_nhwc = jnp.transpose(x, (0, 2, 3, 1))
    mean = jnp.mean(x_nhwc, axis=-1, keepdims=True)
    var = jnp.mean((x_nhwc - mean) ** 2, axis=-1, keepdims=True)
    xn_nhwc = (x_nhwc - mean) * lax.rsqrt(var + eps) * gamma + beta
    xn_cf = jnp.transpose(xn_nhwc, (0, 3, 1, 2)).reshape(B, C, HW)

    # forward_stoken + sp linear
    x_tok = xn_cf.transpose(0, 2, 1)                              # (B, HW, C)
    stoken = jnp.einsum('bmn,bnc->bmc', affinity, x_tok)
    stoken = stoken / (jnp.sum(affinity, axis=2, keepdims=True) + 1e-16)
    stoken = jnp.einsum('bmc,oc->bmo', stoken, wsp)               # (B, M, qk)
    stoken = stoken.transpose(0, 2, 1).reshape(B, num_heads, hd, -1)

    q = jnp.einsum('oc,bcn->bon', wq, xn_cf).reshape(B, num_heads, hd, HW)
    k = jnp.einsum('oc,bcn->bon', wk, xn_cf).reshape(B, num_heads, hd, HW)
    v = jnp.einsum('oc,bcn->bon', wv, xn_cf).reshape(B, num_heads, cd, HW)

    s_attn = jnp.einsum('bhdn,bhdm->bhnm', k, stoken) * scale     # (B,nh,HW,M)
    s_attn = jax.nn.softmax(s_attn, axis=-2)
    s_out = jnp.einsum('bhcn,bhnm->bhcm', v, s_attn)              # (B,nh,cd,M)
    x_attn = jnp.einsum('bhdm,bhdn->bhmn', stoken, q) * scale     # (B,nh,M,HW)
    x_attn = jax.nn.softmax(x_attn, axis=-2)
    x_out = jnp.einsum('bhcm,bhmn->bhcn', s_out, x_attn)          # (B,nh,cd,HW)
    return x_out.reshape(B, C, H, W)


if __name__ == "__main__":
    key = jax.random.PRNGKey(0)
    # Small shapes consistent with the module: per-head dims multiples of 8
    # (TPU sublane tiling), H*W a multiple of 128 (lane tiling).
    B, C, H, W = 2, 32, 16, 16
    num_heads = 2
    qk_dim = 32
    num_spixels = 16

    ks = jax.random.split(key, 8)
    x = jax.random.normal(ks[0], (B, C, H, W), jnp.float32)
    affinity = jax.random.uniform(ks[1], (B, num_spixels, H * W), jnp.float32)
    wq = 0.1 * jax.random.normal(ks[2], (qk_dim, C), jnp.float32)
    wk = 0.1 * jax.random.normal(ks[3], (qk_dim, C), jnp.float32)
    wv = 0.1 * jax.random.normal(ks[4], (C, C), jnp.float32)
    wsp = 0.1 * jax.random.normal(ks[5], (qk_dim, C), jnp.float32)
    gamma = jnp.ones((C,), jnp.float32) + 0.1 * jax.random.normal(ks[6], (C,), jnp.float32)
    beta = 0.1 * jax.random.normal(ks[7], (C,), jnp.float32)

    out = sp_inter_att_forward(
        x, affinity, wq=wq, wk=wk, wv=wv, wsp=wsp,
        gamma=gamma, beta=beta, num_heads=num_heads)
    out = jax.block_until_ready(out)

    with jax.default_matmul_precision("float32"):
        ref = _ref_forward(
            x, affinity, wq=wq, wk=wk, wv=wv, wsp=wsp,
            gamma=gamma, beta=beta, num_heads=num_heads)
    ref = jax.block_until_ready(ref)

    assert out.shape == (B, C, H, W)
    assert jnp.allclose(out, ref, atol=2e-3, rtol=2e-3), (
        "max abs diff: %g" % float(jnp.max(jnp.abs(out - ref))))
    print("KERNEL_OK")
</pallas_src>

<mosaic_0001>
module attributes {stable_mosaic.version = 11 : i64} {
  func.func @_ln_qkv_stoken_kernel(%arg0: i32, %arg1: i32, %arg2: memref<1x32x256xf32, #tpu.memory_space<vmem>>, %arg3: memref<32x1xf32, #tpu.memory_space<vmem>>, %arg4: memref<32x1xf32, #tpu.memory_space<vmem>>, %arg5: memref<96x32xf32, #tpu.memory_space<vmem>>, %arg6: memref<1x16x256xf32, #tpu.memory_space<vmem>>, %arg7: memref<32x32xf32, #tpu.memory_space<vmem>>, %arg8: memref<1x32x256xf32, #tpu.memory_space<vmem>>, %arg9: memref<1x32x256xf32, #tpu.memory_space<vmem>>, %arg10: memref<1x32x256xf32, #tpu.memory_space<vmem>>, %arg11: memref<1x2x16x16xf32, #tpu.memory_space<vmem>>, %arg12: memref<16x32xf32, #tpu.memory_space<vmem>>, %arg13: memref<16x1xf32, #tpu.memory_space<vmem>>) attributes {dimension_semantics = [#tpu.dimension_semantics<parallel>, #tpu.dimension_semantics<arbitrary>], iteration_bounds = array<i64: 2, 1>, scalar_prefetch = 0 : i64, scratch_operands = 2 : i64, tpu.core_type = #tpu.core_type<tc>, window_params = [{transform_indices = @transform_0, window_bounds = array<i64: 1, 32, 256>}, {pipeline_mode = #tpu.pipeline_mode<synchronous>, transform_indices = @transform_1, window_bounds = array<i64: 32, 1>}, {pipeline_mode = #tpu.pipeline_mode<synchronous>, transform_indices = @transform_2, window_bounds = array<i64: 32, 1>}, {pipeline_mode = #tpu.pipeline_mode<synchronous>, transform_indices = @transform_3, window_bounds = array<i64: 96, 32>}, {transform_indices = @transform_4, window_bounds = array<i64: 1, 16, 256>}, {pipeline_mode = #tpu.pipeline_mode<synchronous>, transform_indices = @transform_5, window_bounds = array<i64: 32, 32>}, {transform_indices = @transform_6, window_bounds = array<i64: 1, 32, 256>}, {transform_indices = @transform_7, window_bounds = array<i64: 1, 32, 256>}, {transform_indices = @transform_8, window_bounds = array<i64: 1, 32, 256>}, {transform_indices = @transform_9, window_bounds = array<i64: 1, 2, 16, 16>}]} {
    %c0_i32 = arith.constant 0 : i32
    %0 = arith.cmpi eq, %arg1, %c0_i32 : i32
    %1 = arith.extui %0 : i1 to i32
    %c0_i32_0 = arith.constant 0 : i32
    %2 = arith.cmpi ne, %1, %c0_i32_0 : i32
    scf.if %2 {
      %cst_38 = arith.constant 0.000000e+00 : f32
      %55 = vector.broadcast %cst_38 : f32 to vector<16x32xf32>
      %c0_39 = arith.constant 0 : index
      %c0_40 = arith.constant 0 : index
      %56 = vector.load %arg12[%c0_39, %c0_40] : memref<16x32xf32, #tpu.memory_space<vmem>>, vector<16x32xf32>
      tpu.vector_store %arg12[%c0_39, %c0_40], %55 {strides = array<i32>} : memref<16x32xf32, #tpu.memory_space<vmem>>, vector<16x32xf32>,
      %cst_41 = arith.constant 0.000000e+00 : f32
      %57 = vector.broadcast %cst_41 : f32 to vector<16x1xf32>
      %c0_42 = arith.constant 0 : index
      %c0_43 = arith.constant 0 : index
      %58 = vector.load %arg13[%c0_42, %c0_43] : memref<16x1xf32, #tpu.memory_space<vmem>>, vector<16x1xf32>
      tpu.vector_store %arg13[%c0_42, %c0_43], %57 {strides = array<i32>} : memref<16x1xf32, #tpu.memory_space<vmem>>, vector<16x1xf32>,
    } else {
    }
    %c0 = arith.constant 0 : index
    %c0_1 = arith.constant 0 : index
    %c0_2 = arith.constant 0 : index
    %3 = vector.load %arg2[%c0, %c0_1, %c0_2] : memref<1x32x256xf32, #tpu.memory_space<vmem>>, vector<1x32x256xf32>
    %4 = vector.shape_cast %3 : vector<1x32x256xf32> to vector<32x256xf32>
    %c0_3 = arith.constant 0 : index
    %c0_4 = arith.constant 0 : index
    %5 = vector.load %arg3[%c0_3, %c0_4] : memref<32x1xf32, #tpu.memory_space<vmem>>, vector<32x1xf32>
    %c0_5 = arith.constant 0 : index
    %c0_6 = arith.constant 0 : index
    %6 = vector.load %arg4[%c0_5, %c0_6] : memref<32x1xf32, #tpu.memory_space<vmem>>, vector<32x1xf32>
    %cst = arith.constant dense<0.000000e+00> : vector<256xf32>
    %7 = vector.multi_reduction <add>, %4, %cst [0] : vector<32x256xf32> to vector<256xf32>
    %8 = vector.shape_cast %7 : vector<256xf32> to vector<1x256xf32>
    %cst_7 = arith.constant 3.200000e+01 : f32
    %9 = vector.broadcast %cst_7 : f32 to vector<1x256xf32>
    %10 = arith.divf %8, %9 : vector<1x256xf32>
    %11 = vector.broadcast %10 : vector<1x256xf32> to vector<32x256xf32>
    %12 = arith.subf %4, %11 : vector<32x256xf32>
    %13 = arith.mulf %12, %12 : vector<32x256xf32>
    %cst_8 = arith.constant dense<0.000000e+00> : vector<256xf32>
    %14 = vector.multi_reduction <add>, %13, %cst_8 [0] : vector<32x256xf32> to vector<256xf32>
    %15 = vector.shape_cast %14 : vector<256xf32> to vector<1x256xf32>
    %cst_9 = arith.constant 3.200000e+01 : f32
    %16 = vector.broadcast %cst_9 : f32 to vector<1x256xf32>
    %17 = arith.divf %15, %16 : vector<1x256xf32>
    %cst_10 = arith.constant 9.99999997E-7 : f32
    %18 = vector.broadcast %cst_10 : f32 to vector<1x256xf32>
    %19 = arith.addf %17, %18 : vector<1x256xf32>
    %20 = math.rsqrt %19 : vector<1x256xf32>
    %21 = vector.broadcast %20 : vector<1x256xf32> to vector<32x256xf32>
    %22 = arith.mulf %12, %21 : vector<32x256xf32>
    %23 = vector.broadcast %5 : vector<32x1xf32> to vector<32x256xf32>
    %24 = arith.mulf %22, %23 : vector<32x256xf32>
    %25 = vector.broadcast %6 : vector<32x1xf32> to vector<32x256xf32>
    %26 = arith.addf %24, %25 : vector<32x256xf32>
    %c0_11 = arith.constant 0 : index
    %c0_12 = arith.constant 0 : index
    %27 = vector.load %arg5[%c0_11, %c0_12] : memref<96x32xf32, #tpu.memory_space<vmem>>, vector<96x32xf32>
    %cst_13 = arith.constant dense<0.000000e+00> : vector<96x256xf32>
    %28 = tpu.matmul %27, %26, %cst_13 {dimension_numbers = #tpu.dot_dimension_numbers<[1], [0], [0], [1], [0, 0, 1, 1], [], []>} : vector<96x32xf32>, vector<32x256xf32>, vector<96x256xf32> -> vector<96x256xf32>
    %29 = vector.extract_strided_slice %28 {offsets = [0, 0], sizes = [32, 256], strides = [1, 1]} : vector<96x256xf32> to vector<32x256xf32>
    %c0_14 = arith.constant 0 : index
    %c0_15 = arith.constant 0 : index
    %c0_16 = arith.constant 0 : index
    %30 = vector.load %arg8[%c0_14, %c0_15, %c0_16] : memref<1x32x256xf32, #tpu.memory_space<vmem>>, vector<1x32x256xf32>
    %31 = vector.shape_cast %30 : vector<1x32x256xf32> to vector<32x256xf32>
    %32 = vector.shape_cast %29 : vector<32x256xf32> to vector<1x32x256xf32>
    tpu.vector_store %arg8[%c0_14, %c0_15, %c0_16], %32 {strides = array<i32>} : memref<1x32x256xf32, #tpu.memory_space<vmem>>, vector<1x32x256xf32>,
    %33 = vector.extract_strided_slice %28 {offsets = [32, 0], sizes = [32, 256], strides = [1, 1]} : vector<96x256xf32> to vector<32x256xf32>
    %c0_17 = arith.constant 0 : index
    %c0_18 = arith.constant 0 : index
    %c0_19 = arith.constant 0 : index
    %34 = vector.load %arg9[%c0_17, %c0_18, %c0_19] : memref<1x32x256xf32, #tpu.memory_space<vmem>>, vector<1x32x256xf32>
    %35 = vector.shape_cast %34 : vector<1x32x256xf32> to vector<32x256xf32>
    %36 = vector.shape_cast %33 : vector<32x256xf32> to vector<1x32x256xf32>
    tpu.vector_store %arg9[%c0_17, %c0_18, %c0_19], %36 {strides = array<i32>} : memref<1x32x256xf32, #tpu.memory_space<vmem>>, vector<1x32x256xf32>,
    %37 = vector.extract_strided_slice %28 {offsets = [64, 0], sizes = [32, 256], strides = [1, 1]} : vector<96x256xf32> to vector<32x256xf32>
    %c0_20 = arith.constant 0 : index
    %c0_21 = arith.constant 0 : index
    %c0_22 = arith.constant 0 : index
    %38 = vector.load %arg10[%c0_20, %c0_21, %c0_22] : memref<1x32x256xf32, #tpu.memory_space<vmem>>, vector<1x32x256xf32>
    %39 = vector.shape_cast %38 : vector<1x32x256xf32> to vector<32x256xf32>
    %40 = vector.shape_cast %37 : vector<32x256xf32> to vector<1x32x256xf32>
    tpu.vector_store %arg10[%c0_20, %c0_21, %c0_22], %40 {strides = array<i32>} : memref<1x32x256xf32, #tpu.memory_space<vmem>>, vector<1x32x256xf32>,
    %c0_23 = arith.constant 0 : index
    %c0_24 = arith.constant 0 : index
    %c0_25 = arith.constant 0 : index
    %41 = vector.load %arg6[%c0_23, %c0_24, %c0_25] : memref<1x16x256xf32, #tpu.memory_space<vmem>>, vector<1x16x256xf32>
    %42 = vector.shape_cast %41 : vector<1x16x256xf32> to vector<16x256xf32>
    %c0_26 = arith.constant 0 : index
    %c0_27 = arith.constant 0 : index
    %43 = vector.load %arg12[%c0_26, %c0_27] : memref<16x32xf32, #tpu.memory_space<vmem>>, vector<16x32xf32>
    %cst_28 = arith.constant dense<0.000000e+00> : vector<16x32xf32>
    %44 = tpu.matmul %42, %26, %cst_28 {dimension_numbers = #tpu.dot_dimension_numbers<[1], [1], [0], [0], [0, 0, 1, 0], [], []>} : vector<16x256xf32>, vector<32x256xf32>, vector<16x32xf32> -> vector<16x32xf32>
    %45 = arith.addf %43, %44 : vector<16x32xf32>
    %c0_29 = arith.constant 0 : index
    %c0_30 = arith.constant 0 : index
    %46 = vector.load %arg12[%c0_29, %c0_30] : memref<16x32xf32, #tpu.memory_space<vmem>>, vector<16x32xf32>
    tpu.vector_store %arg12[%c0_29, %c0_30], %45 {strides = array<i32>} : memref<16x32xf32, #tpu.memory_space<vmem>>, vector<16x32xf32>,
    %c0_31 = arith.constant 0 : index
    %c0_32 = arith.constant 0 : index
    %47 = vector.load %arg13[%c0_31, %c0_32] : memref<16x1xf32, #tpu.memory_space<vmem>>, vector<16x1xf32>
    %cst_33 = arith.constant dense<0.000000e+00> : vector<16xf32>
    %48 = vector.multi_reduction <add>, %42, %cst_33 [1] : vector<16x256xf32> to vector<16xf32>
    %49 = vector.shape_cast %48 : vector<16xf32> to vector<16x1xf32>
    %50 = arith.addf %47, %49 : vector<16x1xf32>
    %c0_34 = arith.constant 0 : index
    %c0_35 = arith.constant 0 : index
    %51 = vector.load %arg13[%c0_34, %c0_35] : memref<16x1xf32, #tpu.memory_space<vmem>>, vector<16x1xf32>
    tpu.vector_store %arg13[%c0_34, %c0_35], %50 {strides = array<i32>} : memref<16x1xf32, #tpu.memory_space<vmem>>, vector<16x1xf32>,
    %c0_i32_36 = arith.constant 0 : i32
    %52 = arith.cmpi eq, %arg1, %c0_i32_36 : i32
    %53 = arith.extui %52 : i1 to i32
    %c0_i32_37 = arith.constant 0 : i32
    %54 = arith.cmpi ne, %53, %c0_i32_37 : i32
    scf.if %54 {
      %c0_38 = arith.constant 0 : index
      %c0_39 = arith.constant 0 : index
      %55 = vector.load %arg12[%c0_38, %c0_39] : memref<16x32xf32, #tpu.memory_space<vmem>>, vector<16x32xf32>
      %c0_40 = arith.constant 0 : index
      %c0_41 = arith.constant 0 : index
      %56 = vector.load %arg13[%c0_40, %c0_41] : memref<16x1xf32, #tpu.memory_space<vmem>>, vector<16x1xf32>
      %cst_42 = arith.constant 1.000000e-16 : f32
      %57 = vector.broadcast %cst_42 : f32 to vector<16x1xf32>
      %58 = arith.addf %56, %57 : vector<16x1xf32>
      %cst_43 = arith.constant 1.000000e+00 : f32
      %59 = vector.broadcast %cst_43 : f32 to vector<16x1xf32>
      %60 = arith.divf %59, %58 : vector<16x1xf32>
      %61 = vector.broadcast %60 : vector<16x1xf32> to vector<16x32xf32>
      %62 = arith.mulf %55, %61 : vector<16x32xf32>
      %c0_44 = arith.constant 0 : index
      %c0_45 = arith.constant 0 : index
      %63 = vector.load %arg7[%c0_44, %c0_45] : memref<32x32xf32, #tpu.memory_space<vmem>>, vector<32x32xf32>
      %64 = vector.extract_strided_slice %63 {offsets = [0, 0], sizes = [16, 32], strides = [1, 1]} : vector<32x32xf32> to vector<16x32xf32>
      %cst_46 = arith.constant dense<0.000000e+00> : vector<16x16xf32>
      %65 = tpu.matmul %62, %64, %cst_46 {dimension_numbers = #tpu.dot_dimension_numbers<[1], [1], [0], [0], [0, 0, 1, 0], [], []>} : vector<16x32xf32>, vector<16x32xf32>, vector<16x16xf32> -> vector<16x16xf32>
      %c0_47 = arith.constant 0 : index
      %c0_48 = arith.constant 0 : index
      %c0_49 = arith.constant 0 : index
      %c0_50 = arith.constant 0 : index
      %66 = vector.load %arg11[%c0_47, %c0_48, %c0_49, %c0_50] : memref<1x2x16x16xf32, #tpu.memory_space<vmem>>, vector<1x1x16x16xf32>
      %67 = vector.shape_cast %66 : vector<1x1x16x16xf32> to vector<16x16xf32>
      %68 = vector.shape_cast %65 : vector<16x16xf32> to vector<1x1x16x16xf32>
      tpu.vector_store %arg11[%c0_47, %c0_48, %c0_49, %c0_50], %68 {strides = array<i32>} : memref<1x2x16x16xf32, #tpu.memory_space<vmem>>, vector<1x1x16x16xf32>,
      %69 = vector.extract_strided_slice %63 {offsets = [16, 0], sizes = [16, 32], strides = [1, 1]} : vector<32x32xf32> to vector<16x32xf32>
      %cst_51 = arith.constant dense<0.000000e+00> : vector<16x16xf32>
      %70 = tpu.matmul %62, %69, %cst_51 {dimension_numbers = #tpu.dot_dimension_numbers<[1], [1], [0], [0], [0, 0, 1, 0], [], []>} : vector<16x32xf32>, vector<16x32xf32>, vector<16x16xf32> -> vector<16x16xf32>
      %c0_52 = arith.constant 0 : index
      %c1 = arith.constant 1 : index
      %c0_53 = arith.constant 0 : index
      %c0_54 = arith.constant 0 : index
      %71 = vector.load %arg11[%c0_52, %c1, %c0_53, %c0_54] : memref<1x2x16x16xf32, #tpu.memory_space<vmem>>, vector<1x1x16x16xf32>
      %72 = vector.shape_cast %71 : vector<1x1x16x16xf32> to vector<16x16xf32>
      %73 = vector.shape_cast %70 : vector<16x16xf32> to vector<1x1x16x16xf32>
      tpu.vector_store %arg11[%c0_52, %c1, %c0_53, %c0_54], %73 {strides = array<i32>} : memref<1x2x16x16xf32, #tpu.memory_space<vmem>>, vector<1x1x16x16xf32>,
    } else {
    }
    return
  }
  func.func @transform_0(%arg0: i32, %arg1: i32) -> (i32, i32, i32) {
    %c0_i32 = arith.constant 0 : i32
    %c0_i32_0 = arith.constant 0 : i32
    return %arg0, %c0_i32, %arg1 : i32, i32, i32
  }
  func.func @transform_1(%arg0: i32, %arg1: i32) -> (i32, i32) {
    %c0_i32 = arith.constant 0 : i32
    %c0_i32_0 = arith.constant 0 : i32
    %c0_i32_1 = arith.constant 0 : i32
    return %c0_i32, %c0_i32_0 : i32, i32
  }
  func.func @transform_2(%arg0: i32, %arg1: i32) -> (i32, i32) {
    %c0_i32 = arith.constant 0 : i32
    %c0_i32_0 = arith.constant 0 : i32
    %c0_i32_1 = arith.constant 0 : i32
    return %c0_i32, %c0_i32_0 : i32, i32
  }
  func.func @transform_3(%arg0: i32, %arg1: i32) -> (i32, i32) {
    %c0_i32 = arith.constant 0 : i32
    %c0_i32_0 = arith.constant 0 : i32
    %c0_i32_1 = arith.constant 0 : i32
    return %c0_i32, %c0_i32_0 : i32, i32
  }
  func.func @transform_4(%arg0: i32, %arg1: i32) -> (i32, i32, i32) {
    %c0_i32 = arith.constant 0 : i32
    %c0_i32_0 = arith.constant 0 : i32
    return %arg0, %c0_i32, %arg1 : i32, i32, i32
  }
  func.func @transform_5(%arg0: i32, %arg1: i32) -> (i32, i32) {
    %c0_i32 = arith.constant 0 : i32
    %c0_i32_0 = arith.constant 0 : i32
    %c0_i32_1 = arith.constant 0 : i32
    return %c0_i32, %c0_i32_0 : i32, i32
  }
  func.func @transform_6(%arg0: i32, %arg1: i32) -> (i32, i32, i32) {
    %c0_i32 = arith.constant 0 : i32
    %c0_i32_0 = arith.constant 0 : i32
    return %arg0, %c0_i32, %arg1 : i32, i32, i32
  }
  func.func @transform_7(%arg0: i32, %arg1: i32) -> (i32, i32, i32) {
    %c0_i32 = arith.constant 0 : i32
    %c0_i32_0 = arith.constant 0 : i32
    return %arg0, %c0_i32, %arg1 : i32, i32, i32
  }
  func.func @transform_8(%arg0: i32, %arg1: i32) -> (i32, i32, i32) {
    %c0_i32 = arith.constant 0 : i32
    %c0_i32_0 = arith.constant 0 : i32
    return %arg0, %c0_i32, %arg1 : i32, i32, i32
  }
  func.func @transform_9(%arg0: i32, %arg1: i32) -> (i32, i32, i32, i32) {
    %c0_i32 = arith.constant 0 : i32
    %c0_i32_0 = arith.constant 0 : i32
    %c0_i32_1 = arith.constant 0 : i32
    %c0_i32_2 = arith.constant 0 : i32
    return %arg0, %c0_i32, %c0_i32_0, %c0_i32_1 : i32, i32, i32, i32
  }
}

</mosaic_0001>

<llo_original>
// kernel: tpu_custom_call.1
$region0: #{tpu_custom_call.1}
  #allocation0 [shape = 'u32[]', space=smem, size = 0x4, offset = 0x4, fixed_abs, tag = 'smem constant byte address 0x4 - core index']
  #allocation1 [shape = 'u32[144,128]{1,0:T(1,128)}', space=vmem, size = 0x12000, scoped, tag = 'internal scratch']
  #allocation2 [shape = 'f32[16,32]{1,0:T(8,128)}', space=vmem, size = 0x2000, scoped, tag = 'scratch operand']
  #allocation3 [shape = 'f32[16,1]{1,0:T(8,128)}', space=vmem, size = 0x2000, scoped, tag = 'scratch operand']
  %s0 = inlined_call_operand.vmem [shape: f32[2,32,256], index: 0, kind: input, shape index: {}]
  %s1 = inlined_call_operand.vmem [shape: f32[32,1], index: 1, kind: input, shape index: {}]
  %s2 = inlined_call_operand.vmem [shape: f32[32,1], index: 2, kind: input, shape index: {}]
  %s3 = inlined_call_operand.vmem [shape: f32[96,32], index: 3, kind: input, shape index: {}]
  %s4 = inlined_call_operand.vmem [shape: f32[2,16,256], index: 4, kind: input, shape index: {}]
  %s5 = inlined_call_operand.hbm [shape: f32[32,32], index: 5, kind: input, shape index: {}]
  %s6 = inlined_call_operand.hbm [shape: f32[2,32,256], index: 6, kind: output, shape index: {0}]
  %s7 = inlined_call_operand.hbm [shape: f32[2,32,256], index: 7, kind: output, shape index: {1}]
  %s8 = inlined_call_operand.hbm [shape: f32[2,32,256], index: 8, kind: output, shape index: {2}]
  %s9 = inlined_call_operand.hbm [shape: f32[2,2,16,16], index: 9, kind: output, shape index: {3}]
  %10 = xla_tuple %s6, %s7, %s8, %s9
  %s11 = sld [smem:[#allocation0]]
  $region93: #{tpu_custom_call.1} parent=0
    _
  %s13 = ssub.s32 1, %s11
  %s14 = scalar_select 0, %s13, %s11
  $region1: #{tpu_custom_call.1} parent=0
    #allocation4 [shape = 'u8[16384]{0}', space=vmem, size = 0x4000, scoped, tag = 'input window, operand 5, single buffered']
    #allocation5 [shape = 's32[2]{0}', space=sflag, size = 0x8, scoped, tag = 'scoped memory for tpu_custom_call.1']
    #allocation6 [shape = 's32[2]{0}', space=sflag, size = 0x8, scoped, tag = 'scoped memory for tpu_custom_call.1']
    #allocation7 [shape = 'u8[65536]{0}', space=vmem, size = 0x10000, scoped, tag = 'output window, operand 0']
    #allocation8 [shape = 'u8[65536]{0}', space=vmem, size = 0x10000, scoped, tag = 'output window, operand 1']
    #allocation9 [shape = 's32[2]{0}', space=sflag, size = 0x8, scoped, tag = 'scoped memory for tpu_custom_call.1']
    #allocation10 [shape = 'u8[65536]{0}', space=vmem, size = 0x10000, scoped, tag = 'output window, operand 2']
    #allocation11 [shape = 'u8[32768]{0}', space=vmem, size = 0x8000, scoped, tag = 'output window, operand 3']
    #allocation12 [shape = 's32[2]{0}', space=sflag, size = 0x8, scoped, tag = 'scoped memory for tpu_custom_call.1']
    %15 = vsyncpa [#allocation5], 0
    %16 = vsyncpa [#allocation6], 0
    %s17 = scalar_lea.sflag [#allocation6], 1
    %18 = vsyncpa %s17, 0
    %19 = vsyncpa [#allocation9], 0
    %s20 = scalar_lea.sflag [#allocation9], 1
    %21 = vsyncpa %s20, 0
    %22 = vsyncpa [#allocation12], 0
    %s23 = scalar_lea.sflag [#allocation12], 1
    %24 = vsyncpa %s23, 0
    loop: start=0, step=1, limit=4
    $region2: #{tpu_custom_call.1} parent=1 // loop_pre_header
      _
    $region3: #{tpu_custom_call.1} parent=1 // loop_header
      %s26 = sphi 0, %s30
      %p27 = scmp.ge.s32.totalorder %s26, 4
      %s33 = sphi 0, %s45
      %s34 = sphi 0, %s41
      %s35 = sphi 0, %s33
      %s36 = sphi 0, %s34
      %s37 = sphi 0, %s35
      %s38 = sphi 0, %s36
      %s50 = sphi 0, %s52
      %s53 = sphi 0, %s50
      %s54 = sphi 0, %s53
      %s70 = sphi 0, %s54
      %s74 = sphi 0, %s74
      %s76 = sphi 0, %s74
      %s77 = sphi 0, %s76
      %s91 = sphi 0, %s77
      %s95 = sphi 0, %s95
      %s97 = sphi 0, %s95
      %s98 = sphi 0, %s97
      %s112 = sphi 0, %s98
      %s116 = sphi 0, %s116
      %s118 = sphi 0, %s116
      %s119 = sphi 0, %s118
      %s133 = sphi 0, %s119
      %s141 = sphi 0, %s143
      %s144 = sphi 0, %s141
      %s145 = sphi 0, %s144
      %s161 = sphi 0, %s145
      %s165 = sphi 0, %s165
      %s167 = sphi 0, %s165
      %s168 = sphi 0, %s167
      %s182 = sphi 0, %s168
      %s190 = sphi 0, %s192
      %s193 = sphi 0, %s190
      %s194 = sphi 0, %s193
      %s210 = sphi 0, %s194
      %s218 = sphi 0, %s220
      %s221 = sphi 0, %s218
      %s222 = sphi 0, %s221
      %s238 = sphi 0, %s222
      %s246 = sphi 0, %s248
      %s249 = sphi 0, %s246
      %s250 = sphi 0, %s249
      %s266 = sphi 0, %s250
      %s272 = sphi 0, %s274
      %s275 = sphi 0, %s272
      %s276 = sphi 0, %s275
      %s292 = sphi 0, %s276
    $region4: #{tpu_custom_call.1} parent=1 // loop_header_branch
      %29 = sbr.rel (%p27) target = $region8
    $region5: #{tpu_custom_call.1} parent=1 // loop_body
      %s31 = ssub.s32 %s26, 1
      %s32 = ssub.s32 %s26, 2
      %s39 = sadd.s32 1, %s34
      %p40 = scmp.ge.s32.totalorder %s39, 1
      %s41 = scalar_select %p40, 0, %s39
      %s42 = sadd.s32 1, %s33
      %s43 = scalar_select %p40, %s42, %s33
      %p44 = scmp.ge.s32.totalorder %s43, 2
      %s45 = scalar_select %p44, 0, %s43
      %s46 = ssub.s32 %s33, %s45
      %s47 = ssub.s32 %s34, %s41
      %s48 = sor.u32 %s46, %s47
      %p49 = scmp.eq.s32.totalorder %s48, 0
      %s51 = sadd.s32 %s50, 1
      %s52 = scalar_select %p49, %s50, %s51
      %p55 = pneg %p49
      %p56 = scmp.eq.s32.totalorder %s26, 1
      %p57 = por %p55, %p56
      %p58 = scmp.ne.s32.totalorder %s50, %s53
      %p59 = scmp.eq.s32.totalorder %s26, 0
      %p60 = por %p58, %p59
      %p61 = scmp.ne.s32.totalorder %s50, %s53
      %p62 = scmp.eq.s32.totalorder %s31, 1
      %p63 = por %p61, %p62
      %p64 = scmp.ne.s32.totalorder %s53, %s54
      %p65 = scmp.eq.s32.totalorder %s31, 0
      %p66 = por %p64, %p65
      %p67 = scmp.ne.s32.totalorder %s53, %s54
      %p68 = scmp.eq.s32.totalorder %s32, 1
      %p69 = por %p67, %p68
      %p71 = scmp.ne.s32.totalorder %s54, %s70
      %p72 = scmp.eq.s32.totalorder %s32, 0
      %p73 = por %p71, %p72
      %s75 = sadd.s32 %s74, 1
      %p78 = scmp.eq.s32.totalorder %s26, 1
      %p79 = scmp.ne.s32.totalorder %s74, %s76
      %p80 = scmp.eq.s32.totalorder %s26, 0
      %p81 = por %p79, %p80
      %p82 = scmp.ne.s32.totalorder %s74, %s76
      %p83 = scmp.eq.s32.totalorder %s31, 1
      %p84 = por %p82, %p83
      %p85 = scmp.ne.s32.totalorder %s76, %s77
      %p86 = scmp.eq.s32.totalorder %s31, 0
      %p87 = por %p85, %p86
      %p88 = scmp.ne.s32.totalorder %s76, %s77
      %p89 = scmp.eq.s32.totalorder %s32, 1
      %p90 = por %p88, %p89
      %p92 = scmp.ne.s32.totalorder %s77, %s91
      %p93 = scmp.eq.s32.totalorder %s32, 0
      %p94 = por %p92, %p93
      %s96 = sadd.s32 %s95, 1
      %p99 = scmp.eq.s32.totalorder %s26, 1
      %p100 = scmp.ne.s32.totalorder %s95, %s97
      %p101 = scmp.eq.s32.totalorder %s26, 0
      %p102 = por %p100, %p101
      %p103 = scmp.ne.s32.totalorder %s95, %s97
      %p104 = scmp.eq.s32.totalorder %s31, 1
      %p105 = por %p103, %p104
      %p106 = scmp.ne.s32.totalorder %s97, %s98
      %p107 = scmp.eq.s32.totalorder %s31, 0
      %p108 = por %p106, %p107
      %p109 = scmp.ne.s32.totalorder %s97, %s98
      %p110 = scmp.eq.s32.totalorder %s32, 1
      %p111 = por %p109, %p110
      %p113 = scmp.ne.s32.totalorder %s98, %s112
      %p114 = scmp.eq.s32.totalorder %s32, 0
      %p115 = por %p113, %p114
      %s117 = sadd.s32 %s116, 1
      %p120 = scmp.eq.s32.totalorder %s26, 1
      %p121 = scmp.ne.s32.totalorder %s116, %s118
      %p122 = scmp.eq.s32.totalorder %s26, 0
      %p123 = por %p121, %p122
      %p124 = scmp.ne.s32.totalorder %s116, %s118
      %p125 = scmp.eq.s32.totalorder %s31, 1
      %p126 = por %p124, %p125
      %p127 = scmp.ne.s32.totalorder %s118, %s119
      %p128 = scmp.eq.s32.totalorder %s31, 0
      %p129 = por %p127, %p128
      %p130 = scmp.ne.s32.totalorder %s118, %s119
      %p131 = scmp.eq.s32.totalorder %s32, 1
      %p132 = por %p130, %p131
      %p134 = scmp.ne.s32.totalorder %s119, %s133
      %p135 = scmp.eq.s32.totalorder %s32, 0
      %p136 = por %p134, %p135
      %s137 = ssub.s32 %s33, %s45
      %s138 = ssub.s32 %s34, %s41
      %s139 = sor.u32 %s137, %s138
      %p140 = scmp.eq.s32.totalorder %s139, 0
      %s142 = sadd.s32 %s141, 1
      %s143 = scalar_select %p140, %s141, %s142
      %p146 = pneg %p140
      %p147 = scmp.eq.s32.totalorder %s26, 1
      %p148 = por %p146, %p147
      %p149 = scmp.ne.s32.totalorder %s141, %s144
      %p150 = scmp.eq.s32.totalorder %s26, 0
      %p151 = por %p149, %p150
      %p152 = scmp.ne.s32.totalorder %s141, %s144
      %p153 = scmp.eq.s32.totalorder %s31, 1
      %p154 = por %p152, %p153
      %p155 = scmp.ne.s32.totalorder %s144, %s145
      %p156 = scmp.eq.s32.totalorder %s31, 0
      %p157 = por %p155, %p156
      %p158 = scmp.ne.s32.totalorder %s144, %s145
      %p159 = scmp.eq.s32.totalorder %s32, 1
      %p160 = por %p158, %p159
      %p162 = scmp.ne.s32.totalorder %s145, %s161
      %p163 = scmp.eq.s32.totalorder %s32, 0
      %p164 = por %p162, %p163
      %s166 = sadd.s32 %s165, 1
      %p169 = scmp.eq.s32.totalorder %s26, 1
      %p170 = scmp.ne.s32.totalorder %s165, %s167
      %p171 = scmp.eq.s32.totalorder %s26, 0
      %p172 = por %p170, %p171
      %p173 = scmp.ne.s32.totalorder %s165, %s167
      %p174 = scmp.eq.s32.totalorder %s31, 1
      %p175 = por %p173, %p174
      %p176 = scmp.ne.s32.totalorder %s167, %s168
      %p177 = scmp.eq.s32.totalorder %s31, 0
      %p178 = por %p176, %p177
      %p179 = scmp.ne.s32.totalorder %s167, %s168
      %p180 = scmp.eq.s32.totalorder %s32, 1
      %p181 = por %p179, %p180
      %p183 = scmp.ne.s32.totalorder %s168, %s182
      %p184 = scmp.eq.s32.totalorder %s32, 0
      %p185 = por %p183, %p184
      %s186 = ssub.s32 %s33, %s45
      %s187 = ssub.s32 %s34, %s41
      %s188 = sor.u32 %s186, %s187
      %p189 = scmp.eq.s32.totalorder %s188, 0
      %s191 = sadd.s32 %s190, 1
      %s192 = scalar_select %p189, %s190, %s191
      %p195 = pneg %p189
      %p196 = scmp.eq.s32.totalorder %s26, 1
      %p197 = por %p195, %p196
      %p198 = scmp.ne.s32.totalorder %s190, %s193
      %p199 = scmp.eq.s32.totalorder %s26, 0
      %p200 = por %p198, %p199
      %p201 = scmp.ne.s32.totalorder %s190, %s193
      %p202 = scmp.eq.s32.totalorder %s31, 1
      %p203 = por %p201, %p202
      %p204 = scmp.ne.s32.totalorder %s193, %s194
      %p205 = scmp.eq.s32.totalorder %s31, 0
      %p206 = por %p204, %p205
      %p207 = scmp.ne.s32.totalorder %s193, %s194
      %p208 = scmp.eq.s32.totalorder %s32, 1
      %p209 = por %p207, %p208
      %p211 = scmp.ne.s32.totalorder %s194, %s210
      %p212 = scmp.eq.s32.totalorder %s32, 0
      %p213 = por %p211, %p212
      %s214 = ssub.s32 %s33, %s45
      %s215 = ssub.s32 %s34, %s41
      %s216 = sor.u32 %s214, %s215
      %p217 = scmp.eq.s32.totalorder %s216, 0
      %s219 = sadd.s32 %s218, 1
      %s220 = scalar_select %p217, %s218, %s219
      %p223 = pneg %p217
      %p224 = scmp.eq.s32.totalorder %s26, 1
      %p225 = por %p223, %p224
      %p226 = scmp.ne.s32.totalorder %s218, %s221
      %p227 = scmp.eq.s32.totalorder %s26, 0
      %p228 = por %p226, %p227
      %p229 = scmp.ne.s32.totalorder %s218, %s221
      %p230 = scmp.eq.s32.totalorder %s31, 1
      %p231 = por %p229, %p230
      %p232 = scmp.ne.s32.totalorder %s221, %s222
      %p233 = scmp.eq.s32.totalorder %s31, 0
      %p234 = por %p232, %p233
      %p235 = scmp.ne.s32.totalorder %s221, %s222
      %p236 = scmp.eq.s32.totalorder %s32, 1
      %p237 = por %p235, %p236
      %p239 = scmp.ne.s32.totalorder %s222, %s238
      %p240 = scmp.eq.s32.totalorder %s32, 0
      %p241 = por %p239, %p240
      %s242 = ssub.s32 %s33, %s45
      %s243 = ssub.s32 %s34, %s41
      %s244 = sor.u32 %s242, %s243
      %p245 = scmp.eq.s32.totalorder %s244, 0
      %s247 = sadd.s32 %s246, 1
      %s248 = scalar_select %p245, %s246, %s247
      %p251 = pneg %p245
      %p252 = scmp.eq.s32.totalorder %s26, 1
      %p253 = por %p251, %p252
      %p254 = scmp.ne.s32.totalorder %s246, %s249
      %p255 = scmp.eq.s32.totalorder %s26, 0
      %p256 = por %p254, %p255
      %p257 = scmp.ne.s32.totalorder %s246, %s249
      %p258 = scmp.eq.s32.totalorder %s31, 1
      %p259 = por %p257, %p258
      %p260 = scmp.ne.s32.totalorder %s249, %s250
      %p261 = scmp.eq.s32.totalorder %s31, 0
      %p262 = por %p260, %p261
      %p263 = scmp.ne.s32.totalorder %s249, %s250
      %p264 = scmp.eq.s32.totalorder %s32, 1
      %p265 = por %p263, %p264
      %p267 = scmp.ne.s32.totalorder %s250, %s266
      %p268 = scmp.eq.s32.totalorder %s32, 0
      %p269 = por %p267, %p268
      %s270 = ssub.s32 %s33, %s45
      %p271 = scmp.eq.s32.totalorder %s270, 0
      %s273 = sadd.s32 %s272, 1
      %s274 = scalar_select %p271, %s272, %s273
      %p277 = pneg %p271
      %p278 = scmp.eq.s32.totalorder %s26, 1
      %p279 = por %p277, %p278
      %p280 = scmp.ne.s32.totalorder %s272, %s275
      %p281 = scmp.eq.s32.totalorder %s26, 0
      %p282 = por %p280, %p281
      %p283 = scmp.ne.s32.totalorder %s272, %s275
      %p284 = scmp.eq.s32.totalorder %s31, 1
      %p285 = por %p283, %p284
      %p286 = scmp.ne.s32.totalorder %s275, %s276
      %p287 = scmp.eq.s32.totalorder %s31, 0
      %p288 = por %p286, %p287
      %p289 = scmp.ne.s32.totalorder %s275, %s276
      %p290 = scmp.eq.s32.totalorder %s32, 1
      %p291 = por %p289, %p290
      %p293 = scmp.ne.s32.totalorder %s276, %s292
      %p294 = scmp.eq.s32.totalorder %s32, 0
      %p295 = por %p293, %p294
      %p296 = scmp.le.s32.totalorder 1, %s26
      %p297 = scmp.lt.s32.totalorder %s26, 3
      %p298 = pnand %p296, %p297
      %p299 = pneg %p298
      // Predicated region
      $region9: #{tpu_custom_call.1} parent=5 // pred_check
        _
      $region10: #{tpu_custom_call.1} parent=5 // pred_check_branch
        %301 = sbr.rel (%p298) target = $region12
      $region11: #{tpu_custom_call.1} parent=5 // pred_region
        %s302 = ssub.s32 %s26, 1
        // Predicated region
        $region13: #{tpu_custom_call.1} parent=11 // pred_check
          %p303 = pneg %p87
        $region14: #{tpu_custom_call.1} parent=11 // pred_check_branch
          %305 = sbr.rel (%p303) target = $region16
        $region15: #{tpu_custom_call.1} parent=11 // pred_region
          _
        $region16: #{tpu_custom_call.1} parent=11 // pred_fallthru
          _
        // Predicated region
        $region17: #{tpu_custom_call.1} parent=11 // pred_check
          %p306 = pneg %p108
        $region18: #{tpu_custom_call.1} parent=11 // pred_check_branch
          %308 = sbr.rel (%p306) target = $region20
        $region19: #{tpu_custom_call.1} parent=11 // pred_region
          _
        $region20: #{tpu_custom_call.1} parent=11 // pred_fallthru
          _
        // Predicated region
        $region21: #{tpu_custom_call.1} parent=11 // pred_check
          %p309 = pneg %p129
        $region22: #{tpu_custom_call.1} parent=11 // pred_check_branch
          %311 = sbr.rel (%p309) target = $region24
        $region23: #{tpu_custom_call.1} parent=11 // pred_region
          _
        $region24: #{tpu_custom_call.1} parent=11 // pred_fallthru
          _
        // Predicated region
        $region25: #{tpu_custom_call.1} parent=11 // pred_check
          %p312 = pneg %p178
        $region26: #{tpu_custom_call.1} parent=11 // pred_check_branch
          %314 = sbr.rel (%p312) target = $region28
        $region27: #{tpu_custom_call.1} parent=11 // pred_region
          %s316 = ssub.s32 512, 512
          %317 = vsyncadd [#allocation5], %s316
          %s318 = sshll.u32 [#allocation4], 4
          %s319 = int_to_ptr.vmem [resolvable:$true] %s318
          %324 = dma.hbm_to_vmem [thread:$0]  %s5, 512, %s319, [#allocation5], 128, 128, 8
        $region28: #{tpu_custom_call.1} parent=11 // pred_fallthru
          _
      $region12: #{tpu_custom_call.1} parent=5 // pred_fallthru
        _
      %p325 = scmp.lt.s32.totalorder %s26, 2
      // Predicated region
      $region29: #{tpu_custom_call.1} parent=5 // pred_check
        %p326 = pneg %p325
      $region30: #{tpu_custom_call.1} parent=5 // pred_check_branch
        %328 = sbr.rel (%p326) target = $region32
      $region31: #{tpu_custom_call.1} parent=5 // pred_region
        // Predicated region
        $region33: #{tpu_custom_call.1} parent=31 // pred_check
          %p329 = pneg %p60
        $region34: #{tpu_custom_call.1} parent=31 // pred_check_branch
          %331 = sbr.rel (%p329) target = $region36
        $region35: #{tpu_custom_call.1} parent=31 // pred_region
          %s332 = smul.u32 2, %s34
          %p333 = scmp.lt.s32.totalorder %s33, 1
          %s334 = scalar_select %p333, %s33, 1
          %p335 = scmp.lt.s32.totalorder %s332, 1
          %s336 = scalar_select %p335, %s332, 1
          %s337 = smul.addr %s334, 8
          %s338 = sadd.s32 %s336, %s337
          %s339 = smul.addr %s338, 8
          %s340 = scalar_lea.vmem %s0, %s339
          %s341 = smul.u32 2, %s34
        $region36: #{tpu_custom_call.1} parent=31 // pred_fallthru
          _
        // Predicated region
        $region37: #{tpu_custom_call.1} parent=31 // pred_check
          %p342 = pneg %p151
        $region38: #{tpu_custom_call.1} parent=31 // pred_check_branch
          %344 = sbr.rel (%p342) target = $region40
        $region39: #{tpu_custom_call.1} parent=31 // pred_region
          %s345 = smul.u32 2, %s34
          %p346 = scmp.lt.s32.totalorder %s33, 1
          %s347 = scalar_select %p346, %s33, 1
          %p348 = scmp.lt.s32.totalorder %s345, 1
          %s349 = scalar_select %p348, %s345, 1
          %s350 = smul.addr %s347, 4
          %s351 = sadd.s32 %s349, %s350
          %s352 = smul.addr %s351, 8
          %s353 = scalar_lea.vmem %s4, %s352
          %s354 = smul.u32 2, %s34
        $region40: #{tpu_custom_call.1} parent=31 // pred_fallthru
          _
      $region32: #{tpu_custom_call.1} parent=5 // pred_fallthru
        _
      %p355 = scmp.le.s32.totalorder 1, %s26
      %p356 = scmp.lt.s32.totalorder %s26, 3
      %p357 = pnand %p355, %p356
      %p358 = pneg %p357
      // Predicated region
      $region41: #{tpu_custom_call.1} parent=5 // pred_check
        _
      $region42: #{tpu_custom_call.1} parent=5 // pred_check_branch
        %360 = sbr.rel (%p357) target = $region44
      $region43: #{tpu_custom_call.1} parent=5 // pred_region
        %s361 = ssub.s32 %s26, 1
        // Predicated region
        $region45: #{tpu_custom_call.1} parent=43 // pred_check
          %p362 = pneg %p178
        $region46: #{tpu_custom_call.1} parent=43 // pred_check_branch
          %364 = sbr.rel (%p362) target = $region48
        $region47: #{tpu_custom_call.1} parent=43 // pred_region
          %365 = dma.done [#allocation5], 512
        $region48: #{tpu_custom_call.1} parent=43 // pred_fallthru
          _
        %s366 = smul.u32 2, %s36
        %p367 = scmp.lt.s32.totalorder %s35, 1
        %s368 = scalar_select %p367, %s35, 1
        %p369 = scmp.lt.s32.totalorder %s366, 1
        %s370 = scalar_select %p369, %s366, 1
        %s371 = smul.addr %s368, 8
        %s372 = sadd.s32 %s370, %s371
        %s373 = smul.addr %s372, 8
        %s374 = scalar_lea.vmem %s0, %s373
        %p375 = pneg %p66
        %p376 = pneg %p63
        %p377 = pneg %p87
        %p378 = pneg %p84
        %p379 = pneg %p108
        %p380 = pneg %p105
        %p381 = pneg %p129
        %p382 = pneg %p126
        %s383 = smul.u32 2, %s36
        %p384 = scmp.lt.s32.totalorder %s35, 1
        %s385 = scalar_select %p384, %s35, 1
        %p386 = scmp.lt.s32.totalorder %s383, 1
        %s387 = scalar_select %p386, %s383, 1
        %s388 = smul.addr %s385, 4
        %s389 = sadd.s32 %s387, %s388
        %s390 = smul.addr %s389, 8
        %s391 = scalar_lea.vmem %s4, %s390
        %p392 = pneg %p157
        %p393 = pneg %p154
        %p394 = pneg %p178
        %p395 = pneg %p175
        %p396 = pneg %p206
        %p397 = pneg %p203
        %s398 = sand.u32 %s193, 1
        %s399 = scalar_lea.sflag [#allocation6], %s398
        %s400 = sand.u32 %s193, 1
        %s401 = smul.addr %s400, 64
        %s402 = scalar_lea.vmem [#allocation7], %s401
        %p403 = pneg %p234
        %p404 = pneg %p231
        %s405 = sand.u32 %s31, 1
        %s406 = scalar_lea.sflag [#allocation9], %s405
        %s407 = sand.u32 %s221, 1
        %s408 = smul.addr %s407, 64
        %s409 = scalar_lea.vmem [#allocation8], %s408
        %p410 = pneg %p262
        %p411 = pneg %p259
        %s412 = sand.u32 %s31, 1
        %s413 = scalar_lea.sflag [#allocation9], %s412
        %s414 = sand.u32 %s249, 1
        %s415 = smul.addr %s414, 64
        %s416 = scalar_lea.vmem [#allocation10], %s415
        %p417 = pneg %p288
        %p418 = pneg %p285
        %s419 = sand.u32 %s275, 1
        %s420 = scalar_lea.sflag [#allocation12], %s419
        %s421 = sand.u32 %s275, 1
        %s422 = smul.addr %s421, 32
        %s423 = scalar_lea.vmem [#allocation11], %s422
        %s424 = smul.u32 2, %s36
        %p425 = scmp.lt.s32.totalorder %s35, 1
        %s426 = scalar_select %p425, %s35, 1
        %p427 = scmp.lt.s32.totalorder %s424, 1
        %s428 = scalar_select %p427, %s424, 1
        %s429 = smul.addr %s426, 8
        %s430 = sadd.s32 %s428, %s429
        %s431 = smul.addr %s430, 8
        %s432 = scalar_lea.vmem %s0, %s431
        %s433 = smul.u32 2, %s36
        %s434 = smul.u32 2, %s36
        %p435 = scmp.lt.s32.totalorder %s35, 1
        %s436 = scalar_select %p435, %s35, 1
        %p437 = scmp.lt.s32.totalorder %s434, 1
        %s438 = scalar_select %p437, %s434, 1
        %s439 = smul.addr %s436, 4
        %s440 = sadd.s32 %s438, %s439
        %s441 = smul.addr %s440, 8
        %s442 = scalar_lea.vmem %s4, %s441
        %s443 = smul.u32 2, %s36
        %s444 = smul.u32 2, %s36
        %s445 = smul.u32 2, %s36
        %s446 = smul.u32 2, %s36
        %p447 = scmp.eq.s32.totalorder %s36, 0
        // Predicated region
        $region49: #{tpu_custom_call.1} parent=43 // pred_check
          %p448 = pneg %p447
        $region50: #{tpu_custom_call.1} parent=43 // pred_check_branch
          %450 = sbr.rel (%p448) target = $region52
        $region51: #{tpu_custom_call.1} parent=43 // pred_region
          %vm451 = vcmask 261120
          %452 = vst.msk [vmem:[#allocation2] sm:$0xff] %vm451, 0.0
          %453 = vst.msk [vmem:[#allocation2 + $0x8] sm:$0xff] %vm451, 0.0
          %vm454 = vcmask 7168
          %455 = vst.msk [vmem:[#allocation3] sm:$0xff] %vm454, 0.0
          %456 = vst.msk [vmem:[#allocation3 + $0x8] sm:$0xff] %vm454, 0.0
        $region52: #{tpu_custom_call.1} parent=43 // pred_fallthru
          _
        %v457 = vld [vmem:[%s432] sm:$0xff]
        %v458 = vld [vmem:[%s432 + $0x8] sm:$0xff]
        %v459 = vld [vmem:[%s432 + $0x10] sm:$0xff]
        %v460 = vld [vmem:[%s432 + $0x18] sm:$0xff]
        %v461 = vld [vmem:[%s432 + $0x20] sm:$0xff]
        %v462 = vld [vmem:[%s432 + $0x28] sm:$0xff]
        %v463 = vld [vmem:[%s432 + $0x30] sm:$0xff]
        %v464 = vld [vmem:[%s432 + $0x38] sm:$0xff]
        %v465 = vld [vmem:[%s1] sm:$0xff]
        %v466 = vld [vmem:[%s1 + $0x8] sm:$0xff]
        %v467 = vld [vmem:[%s1 + $0x10] sm:$0xff]
        %v468 = vld [vmem:[%s1 + $0x18] sm:$0xff]
        %v469 = vld [vmem:[%s2] sm:$0xff]
        %v470 = vld [vmem:[%s2 + $0x8] sm:$0xff]
        %v471 = vld [vmem:[%s2 + $0x10] sm:$0xff]
        %v472 = vld [vmem:[%s2 + $0x18] sm:$0xff]
        %v473 = vadd.f32 %v457, %v459
        %v474 = vadd.f32 %v473, %v461
        %v475 = vadd.f32 %v474, %v463
        %v476 = vrot.slane %v475, 4
        %v477 = vadd.f32 %v475, %v476
        %v478 = vrot.slane %v477, 2
        %v479 = vadd.f32 %v477, %v478
        %v480 = vrot.slane %v479, 1
        %v481 = vadd.f32 %v479, %v480
        %v482 = vadd.f32 %v458, %v460
        %v483 = vadd.f32 %v482, %v462
        %v484 = vadd.f32 %v483, %v464
        %v485 = vrot.slane %v484, 4
        %v486 = vadd.f32 %v484, %v485
        %v487 = vrot.slane %v486, 2
        %v488 = vadd.f32 %v486, %v487
        %v489 = vrot.slane %v488, 1
        %v490 = vadd.f32 %v488, %v489
        %v491 = vrcp.pop 32.0
        %v492 = vmul.f32 %v481, %v491
        %v493 = vmul.f32 %v490, %v491
        %v494 = vsub.f32 %v457, %v492
        %v495 = vsub.f32 %v458, %v493
        %v496 = vsub.f32 %v459, %v492
        %v497 = vsub.f32 %v460, %v493
        %v498 = vsub.f32 %v461, %v492
        %v499 = vsub.f32 %v462, %v493
        %v500 = vsub.f32 %v463, %v492
        %v501 = vsub.f32 %v464, %v493
        %v502 = vmul.f32 %v494, %v494
        %v503 = vmul.f32 %v495, %v495
        %v504 = vmul.f32 %v496, %v496
        %v505 = vmul.f32 %v497, %v497
        %v506 = vmul.f32 %v498, %v498
        %v507 = vmul.f32 %v499, %v499
        %v508 = vmul.f32 %v500, %v500
        %v509 = vmul.f32 %v501, %v501
        %v510 = vadd.f32 %v502, %v504
        %v511 = vadd.f32 %v510, %v506
        %v512 = vadd.f32 %v511, %v508
        %v513 = vrot.slane %v512, 4
        %v514 = vadd.f32 %v512, %v513
        %v515 = vrot.slane %v514, 2
        %v516 = vadd.f32 %v514, %v515
        %v517 = vrot.slane %v516, 1
        %v518 = vadd.f32 %v516, %v517
        %v519 = vadd.f32 %v503, %v505
        %v520 = vadd.f32 %v519, %v507
        %v521 = vadd.f32 %v520, %v509
        %v522 = vrot.slane %v521, 4
        %v523 = vadd.f32 %v521, %v522
        %v524 = vrot.slane %v523, 2
        %v525 = vadd.f32 %v523, %v524
        %v526 = vrot.slane %v525, 1
        %v527 = vadd.f32 %v525, %v526
        %v528 = vmul.f32 %v518, %v491
        %v529 = vmul.f32 %v527, %v491
        %v530 = vadd.f32 %v528, 1e-06
        %v531 = vadd.f32 %v529, 1e-06
        %v532 = vrsqrt.pop %v530
        %v533 = vrsqrt.pop %v531
        %v534 = vmul.f32 %v494, %v532
        %v535 = vmul.f32 %v495, %v533
        %v536 = vmul.f32 %v496, %v532
        %v537 = vmul.f32 %v497, %v533
        %v538 = vmul.f32 %v498, %v532
        %v539 = vmul.f32 %v499, %v533
        %v540 = vmul.f32 %v500, %v532
        %v541 = vmul.f32 %v501, %v533
        %543 = vset.pattern.permute.xlu0 0
        %544 = vperm.xlu0 %543, %v465
        %v545 = vpop.permute.xlu0 %544
        %548 = vset.pattern.permute.xlu0 0
        %549 = vperm.xlu0 %548, %v466
        %v550 = vpop.permute.xlu0 %549
        %553 = vset.pattern.permute.xlu0 0
        %554 = vperm.xlu0 %553, %v467
        %v555 = vpop.permute.xlu0 %554
        %558 = vset.pattern.permute.xlu0 0
        %559 = vperm.xlu0 %558, %v468
        %v560 = vpop.permute.xlu0 %559
        %v562 = vmul.f32 %v534, %v545
        %v563 = vmul.f32 %v535, %v545
        %v564 = vmul.f32 %v536, %v550
        %v565 = vmul.f32 %v537, %v550
        %v566 = vmul.f32 %v538, %v555
        %v567 = vmul.f32 %v539, %v555
        %v568 = vmul.f32 %v540, %v560
        %v569 = vmul.f32 %v541, %v560
        %571 = vset.pattern.permute.xlu0 0
        %572 = vperm.xlu0 %571, %v469
        %v573 = vpop.permute.xlu0 %572
        %576 = vset.pattern.permute.xlu0 0
        %577 = vperm.xlu0 %576, %v470
        %v578 = vpop.permute.xlu0 %577
        %581 = vset.pattern.permute.xlu0 0
        %582 = vperm.xlu0 %581, %v471
        %v583 = vpop.permute.xlu0 %582
        %586 = vset.pattern.permute.xlu0 0
        %587 = vperm.xlu0 %586, %v472
        %v588 = vpop.permute.xlu0 %587
        %v590 = vadd.f32 %v562, %v573
        %v591 = vadd.f32 %v563, %v573
        %v592 = vadd.f32 %v564, %v578
        %v593 = vadd.f32 %v565, %v578
        %v594 = vadd.f32 %v566, %v583
        %v595 = vadd.f32 %v567, %v583
        %v596 = vadd.f32 %v568, %v588
        %v597 = vadd.f32 %v569, %v588
        %v598 = vld [vmem:[%s3] sm:$0xff]
        %v599 = vld [vmem:[%s3 + $0x8] sm:$0xff]
        %v600 = vld [vmem:[%s3 + $0x10] sm:$0xff]
        %v601 = vld [vmem:[%s3 + $0x18] sm:$0xff]
        %v602 = vld [vmem:[%s3 + $0x20] sm:$0xff]
        %v603 = vld [vmem:[%s3 + $0x28] sm:$0xff]
        %v604 = vld [vmem:[%s3 + $0x30] sm:$0xff]
        %v605 = vld [vmem:[%s3 + $0x38] sm:$0xff]
        %v606 = vld [vmem:[%s3 + $0x40] sm:$0xff]
        %v607 = vld [vmem:[%s3 + $0x48] sm:$0xff]
        %v608 = vld [vmem:[%s3 + $0x50] sm:$0xff]
        %v609 = vld [vmem:[%s3 + $0x58] sm:$0xff]
        %vm610 = vcmask 261120
        %v612 = vsel %vm610, %v598, 0
        %v615 = vsel %vm610, %v599, 0
        %v618 = vsel %vm610, %v600, 0
        %v621 = vsel %vm610, %v601, 0
        %v624 = vsel %vm610, %v602, 0
        %v627 = vsel %vm610, %v603, 0
        %v630 = vsel %vm610, %v604, 0
        %v633 = vsel %vm610, %v605, 0
        %v636 = vsel %vm610, %v606, 0
        %v639 = vsel %vm610, %v607, 0
        %v642 = vsel %vm610, %v608, 0
        %v645 = vsel %vm610, %v609, 0
        %647 = vmatprep.subr.mxu0 %v591
        %648 = vmatpush1.msra.mxu0 %v590
        %649 = vmatprep.subr.mxu0 %v593
        %650 = vmatpush1.msra.mxu0 %v592
        %651 = vmatprep.subr.mxu0 %v595
        %652 = vmatpush1.msra.mxu0 %v594
        %653 = vmatprep.subr.mxu0 %v597
        %654 = vmatpush1.msra.mxu0 %v596
        %655 = vmatprep.subr.mxu0 0.0
        %656 = vmatpush1.msra.mxu0 0.0
        %657 = vmatprep.subr.mxu0 0.0
        %658 = vmatpush1.msra.mxu0 0.0
        %659 = vmatprep.subr.mxu0 0.0
        %660 = vmatpush1.msra.mxu0 0.0
        %661 = vmatprep.subr.mxu0 0.0
        %662 = vmatpush1.msra.mxu0 0.0
        %663 = vmatprep.subr.mxu0 0.0
        %664 = vmatpush1.msra.mxu0 0.0
        %665 = vmatprep.subr.mxu0 0.0
        %666 = vmatpush1.msra.mxu0 0.0
        %667 = vmatprep.subr.mxu0 0.0
        %668 = vmatpush1.msra.mxu0 0.0
        %669 = vmatprep.subr.mxu0 0.0
        %670 = vmatpush1.msra.mxu0 0.0
        %671 = vmatprep.subr.mxu0 0.0
        %672 = vmatpush1.msra.mxu0 0.0
        %673 = vmatprep.subr.mxu0 0.0
        %674 = vmatpush1.msra.mxu0 0.0
        %675 = vmatprep.subr.mxu0 0.0
        %676 = vmatpush1.msra.mxu0 0.0
        %677 = vmatprep.subr.mxu0 0.0
        %678 = vmatpush1.msra.mxu0 0.0
        %679 = vmatprep.subr.mxu0 0.0
        %680 = vmatpush1.msra.mxu0 0.0
        %681 = vmatprep.subr.mxu0 0.0
        %682 = vmatpush1.msra.mxu0 0.0
        %683 = vmatprep.subr.mxu0 0.0
        %684 = vmatpush1.msra.mxu0 0.0
        %685 = vmatprep.subr.mxu0 0.0
        %686 = vmatpush1.msra.mxu0 0.0
        %687 = vmatprep.subr.mxu0 0.0
        %688 = vmatpush1.msra.mxu0 0.0
        %689 = vmatprep.subr.mxu0 0.0
        %690 = vmatpush1.msra.mxu0 0.0
        %691 = vmatprep.subr.mxu0 0.0
        %692 = vmatpush1.msra.mxu0 0.0
        %693 = vmatprep.subr.mxu0 0.0
        %694 = vmatpush1.msra.mxu0 0.0
        %695 = vmatprep.subr.mxu0 0.0
        %696 = vmatpush1.msra.mxu0 0.0
        %697 = vmatprep.subr.mxu0 0.0
        %698 = vmatpush1.msra.mxu0 0.0
        %699 = vmatprep.subr.mxu0 0.0
        %700 = vmatpush1.msra.mxu0 0.0
        %701 = vmatprep.subr.mxu0 0.0
        %702 = vmatpush1.msra.mxu0 0.0
        %703 = vmatprep.subr.mxu0 0.0
        %704 = vmatpush1.msra.mxu0 0.0
        %705 = vmatprep.subr.mxu0 0.0
        %706 = vmatpush1.msra.mxu0 0.0
        %707 = vmatprep.subr.mxu0 0.0
        %708 = vmatpush1.msra.mxu0 0.0
        %709 = vmatprep.subr.mxu0 0.0
        %710 = vmatpush1.msra.mxu0 0.0
        %711 = vmatprep.mubr.f32.mxu0 0.0
        %712 = vmatmul.mubr.f32.gmra.mrb[0].mxu0 %v612
        %v713 = vpop.f32.mrb[0].mxu0
        %v714 = vadd.f32 0.0, %v713
        %v715 = vpop.f32.mrb[0].mxu0
        %v716 = vadd.f32 0.0, %v715
        %717 = vmatprep.mubr.f32.mxu0 0.0
        %718 = vmatmul.mubr.f32.gmra.mrb[0].mxu0 %v615
        %v719 = vpop.f32.mrb[0].mxu0
        %v720 = vadd.f32 0.0, %v719
        %v721 = vpop.f32.mrb[0].mxu0
        %v722 = vadd.f32 0.0, %v721
        %723 = vmatprep.mubr.f32.mxu0 0.0
        %724 = vmatmul.mubr.f32.gmra.mrb[0].mxu0 %v618
        %v725 = vpop.f32.mrb[0].mxu0
        %v726 = vadd.f32 0.0, %v725
        %v727 = vpop.f32.mrb[0].mxu0
        %v728 = vadd.f32 0.0, %v727
        %729 = vmatprep.mubr.f32.mxu0 0.0
        %730 = vmatmul.mubr.f32.gmra.mrb[0].mxu0 %v621
        %v731 = vpop.f32.mrb[0].mxu0
        %v732 = vadd.f32 0.0, %v731
        %v733 = vpop.f32.mrb[0].mxu0
        %v734 = vadd.f32 0.0, %v733
        %735 = vmatprep.mubr.f32.mxu0 0.0
        %736 = vmatmul.mubr.f32.gmra.mrb[0].mxu0 %v624
        %v737 = vpop.f32.mrb[0].mxu0
        %v738 = vadd.f32 0.0, %v737
        %v739 = vpop.f32.mrb[0].mxu0
        %v740 = vadd.f32 0.0, %v739
        %741 = vmatprep.mubr.f32.mxu0 0.0
        %742 = vmatmul.mubr.f32.gmra.mrb[0].mxu0 %v627
        %v743 = vpop.f32.mrb[0].mxu0
        %v744 = vadd.f32 0.0, %v743
        %v745 = vpop.f32.mrb[0].mxu0
        %v746 = vadd.f32 0.0, %v745
        %747 = vmatprep.mubr.f32.mxu0 0.0
        %748 = vmatmul.mubr.f32.gmra.mrb[0].mxu0 %v630
        %v749 = vpop.f32.mrb[0].mxu0
        %v750 = vadd.f32 0.0, %v749
        %v751 = vpop.f32.mrb[0].mxu0
        %v752 = vadd.f32 0.0, %v751
        %753 = vmatprep.mubr.f32.mxu0 0.0
        %754 = vmatmul.mubr.f32.gmra.mrb[0].mxu0 %v633
        %v755 = vpop.f32.mrb[0].mxu0
        %v756 = vadd.f32 0.0, %v755
        %v757 = vpop.f32.mrb[0].mxu0
        %v758 = vadd.f32 0.0, %v757
        %759 = vmatprep.mubr.f32.mxu0 0.0
        %760 = vmatmul.mubr.f32.gmra.mrb[0].mxu0 %v636
        %v761 = vpop.f32.mrb[0].mxu0
        %v762 = vadd.f32 0.0, %v761
        %v763 = vpop.f32.mrb[0].mxu0
        %v764 = vadd.f32 0.0, %v763
        %765 = vmatprep.mubr.f32.mxu0 0.0
        %766 = vmatmul.mubr.f32.gmra.mrb[0].mxu0 %v639
        %v767 = vpop.f32.mrb[0].mxu0
        %v768 = vadd.f32 0.0, %v767
        %v769 = vpop.f32.mrb[0].mxu0
        %v770 = vadd.f32 0.0, %v769
        %771 = vmatprep.mubr.f32.mxu0 0.0
        %772 = vmatmul.mubr.f32.gmra.mrb[0].mxu0 %v642
        %v773 = vpop.f32.mrb[0].mxu0
        %v774 = vadd.f32 0.0, %v773
        %v775 = vpop.f32.mrb[0].mxu0
        %v776 = vadd.f32 0.0, %v775
        %777 = vmatprep.mubr.f32.mxu0 0.0
        %778 = vmatmul.mubr.f32.gmra.mrb[0].mxu0 %v645
        %v779 = vpop.f32.mrb[0].mxu0
        %v780 = vadd.f32 0.0, %v779
        %v781 = vpop.f32.mrb[0].mxu0
        %v782 = vadd.f32 0.0, %v781
        %783 = vdwg.mxu0
        %784 = vst [vmem:[%s402] sm:$0xff] %v714
        %785 = vst [vmem:[%s402 + $0x8] sm:$0xff] %v716
        %786 = vst [vmem:[%s402 + $0x10] sm:$0xff] %v720
        %787 = vst [vmem:[%s402 + $0x18] sm:$0xff] %v722
        %788 = vst [vmem:[%s402 + $0x20] sm:$0xff] %v726
        %789 = vst [vmem:[%s402 + $0x28] sm:$0xff] %v728
        %790 = vst [vmem:[%s402 + $0x30] sm:$0xff] %v732
        %791 = vst [vmem:[%s402 + $0x38] sm:$0xff] %v734
        %792 = vst [vmem:[%s409] sm:$0xff] %v738
        %793 = vst [vmem:[%s409 + $0x8] sm:$0xff] %v740
        %794 = vst [vmem:[%s409 + $0x10] sm:$0xff] %v744
        %795 = vst [vmem:[%s409 + $0x18] sm:$0xff] %v746
        %796 = vst [vmem:[%s409 + $0x20] sm:$0xff] %v750
        %797 = vst [vmem:[%s409 + $0x28] sm:$0xff] %v752
        %798 = vst [vmem:[%s409 + $0x30] sm:$0xff] %v756
        %799 = vst [vmem:[%s409 + $0x38] sm:$0xff] %v758
        %800 = vst [vmem:[%s416] sm:$0xff] %v762
        %801 = vst [vmem:[%s416 + $0x8] sm:$0xff] %v764
        %802 = vst [vmem:[%s416 + $0x10] sm:$0xff] %v768
        %803 = vst [vmem:[%s416 + $0x18] sm:$0xff] %v770
        %804 = vst [vmem:[%s416 + $0x20] sm:$0xff] %v774
        %805 = vst [vmem:[%s416 + $0x28] sm:$0xff] %v776
        %806 = vst [vmem:[%s416 + $0x30] sm:$0xff] %v780
        %807 = vst [vmem:[%s416 + $0x38] sm:$0xff] %v782
        %v808 = vld [vmem:[%s442] sm:$0xff]
        %v809 = vld [vmem:[%s442 + $0x8] sm:$0xff]
        %v810 = vld [vmem:[%s442 + $0x10] sm:$0xff]
        %v811 = vld [vmem:[%s442 + $0x18] sm:$0xff]
        %v812 = vld [vmem:[#allocation2] sm:$0xff]
        %v813 = vld [vmem:[#allocation2 + $0x8] sm:$0xff]
        %814 = vmatprep.subr.mxu0 %v591
        %815 = vmatpush1.xpose.msra.mxu0 %v590
        %816 = vmatprep.subr.mxu0 %v593
        %817 = vmatpush1.xpose.msra.mxu0 %v592
        %818 = vmatprep.subr.mxu0 %v595
        %819 = vmatpush1.xpose.msra.mxu0 %v594
        %820 = vmatprep.subr.mxu0 %v597
        %821 = vmatpush1.xpose.msra.mxu0 %v596
        %822 = vmatprep.subr.mxu0 0.0
        %823 = vmatpush1.xpose.msra.mxu0 0.0
        %824 = vmatprep.subr.mxu0 0.0
        %825 = vmatpush1.xpose.msra.mxu0 0.0
        %826 = vmatprep.subr.mxu0 0.0
        %827 = vmatpush1.xpose.msra.mxu0 0.0
        %828 = vmatprep.subr.mxu0 0.0
        %829 = vmatpush1.xpose.msra.mxu0 0.0
        %830 = vmatprep.subr.mxu0 0.0
        %831 = vmatpush1.xpose.msra.mxu0 0.0
        %832 = vmatprep.subr.mxu0 0.0
        %833 = vmatpush1.xpose.msra.mxu0 0.0
        %834 = vmatprep.subr.mxu0 0.0
        %835 = vmatpush1.xpose.msra.mxu0 0.0
        %836 = vmatprep.subr.mxu0 0.0
        %837 = vmatpush1.xpose.msra.mxu0 0.0
        %838 = vmatprep.subr.mxu0 0.0
        %839 = vmatpush1.xpose.msra.mxu0 0.0
        %840 = vmatprep.subr.mxu0 0.0
        %841 = vmatpush1.xpose.msra.mxu0 0.0
        %842 = vmatprep.subr.mxu0 0.0
        %843 = vmatpush1.xpose.msra.mxu0 0.0
        %844 = vmatprep.subr.mxu0 0.0
        %845 = vmatpush1.xpose.msra.mxu0 0.0
        %846 = vmatprep.subr.mxu0 0.0
        %847 = vmatpush1.xpose.msra.mxu0 0.0
        %848 = vmatprep.subr.mxu0 0.0
        %849 = vmatpush1.xpose.msra.mxu0 0.0
        %850 = vmatprep.subr.mxu0 0.0
        %851 = vmatpush1.xpose.msra.mxu0 0.0
        %852 = vmatprep.subr.mxu0 0.0
        %853 = vmatpush1.xpose.msra.mxu0 0.0
        %854 = vmatprep.subr.mxu0 0.0
        %855 = vmatpush1.xpose.msra.mxu0 0.0
        %856 = vmatprep.subr.mxu0 0.0
        %857 = vmatpush1.xpose.msra.mxu0 0.0
        %858 = vmatprep.subr.mxu0 0.0
        %859 = vmatpush1.xpose.msra.mxu0 0.0
        %860 = vmatprep.subr.mxu0 0.0
        %861 = vmatpush1.xpose.msra.mxu0 0.0
        %862 = vmatprep.subr.mxu0 0.0
        %863 = vmatpush1.xpose.msra.mxu0 0.0
        %864 = vmatprep.subr.mxu0 0.0
        %865 = vmatpush1.xpose.msra.mxu0 0.0
        %866 = vmatprep.subr.mxu0 0.0
        %867 = vmatpush1.xpose.msra.mxu0 0.0
        %868 = vmatprep.subr.mxu0 0.0
        %869 = vmatpush1.xpose.msra.mxu0 0.0
        %870 = vmatprep.subr.mxu0 0.0
        %871 = vmatpush1.xpose.msra.mxu0 0.0
        %872 = vmatprep.subr.mxu0 0.0
        %873 = vmatpush1.xpose.msra.mxu0 0.0
        %874 = vmatprep.subr.mxu0 0.0
        %875 = vmatpush1.xpose.msra.mxu0 0.0
        %876 = vmatprep.subr.mxu0 0.0
        %877 = vmatpush1.xpose.msra.mxu0 0.0
        %878 = vmatprep.mubr.f32.mxu0 %v809
        %879 = vmatmul.mubr.f32.gmra.mrb[0].mxu0 %v808
        %v880 = vpop.f32.mrb[0].mxu0
        %v881 = vadd.f32 0.0, %v880
        %v882 = vpop.f32.mrb[0].mxu0
        %883 = vmatprep.mubr.f32.mxu0 %v811
        %884 = vmatmul.mubr.f32.gmra.mrb[0].mxu0 %v810
        %v885 = vpop.f32.mrb[0].mxu0
        %v886 = vadd.f32 0.0, %v885
        %v887 = vpop.f32.mrb[0].mxu0
        %888 = vdwg.mxu0
        %v889 = vadd.f32 %v812, %v881
        %v890 = vadd.f32 %v813, %v886
        %891 = vst.msk [vmem:[#allocation2] sm:$0xff] %vm610, %v889
        %892 = vst.msk [vmem:[#allocation2 + $0x8] sm:$0xff] %vm610, %v890
        %v893 = vld [vmem:[#allocation3] sm:$0xff]
        %v894 = vld [vmem:[#allocation3 + $0x8] sm:$0xff]
        %v895 = vadd.f32 %v808, %v809
        %896 = vadd.xlane.f32.xlu0 %v895
        %v897 = vpop.xlane.xlu0 %896
        %v898 = vadd.f32 %v810, %v811
        %899 = vadd.xlane.f32.xlu0 %v898
        %v900 = vpop.xlane.xlu0 %899
        %v901 = vadd.f32 %v893, %v897
        %v902 = vadd.f32 %v894, %v900
        %vm903 = vcmask 7168
        %904 = vst.msk [vmem:[#allocation3] sm:$0xff] %vm903, %v901
        %905 = vst.msk [vmem:[#allocation3 + $0x8] sm:$0xff] %vm903, %v902
        // Predicated region
        $region53: #{tpu_custom_call.1} parent=43 // pred_check
          %p906 = pneg %p447
        $region54: #{tpu_custom_call.1} parent=43 // pred_check_branch
          %908 = sbr.rel (%p906) target = $region56
        $region55: #{tpu_custom_call.1} parent=43 // pred_region
          %v909 = vld [vmem:[#allocation2] sm:$0xff]
          %v910 = vld [vmem:[#allocation2 + $0x8] sm:$0xff]
          %v911 = vld [vmem:[#allocation3] sm:$0xff]
          %v912 = vld [vmem:[#allocation3 + $0x8] sm:$0xff]
          %v913 = vadd.f32 %v911, 1e-16
          %v914 = vadd.f32 %v912, 1e-16
          %v915 = vrcp.pop %v913
          %v916 = vmul.f32 1.0, %v915
          %v917 = vrcp.pop %v914
          %v918 = vmul.f32 1.0, %v917
          %920 = vset.pattern.permute.xlu0 0
          %921 = vperm.xlu0 %920, %v916
          %v922 = vpop.permute.xlu0 %921
          %925 = vset.pattern.permute.xlu0 0
          %926 = vperm.xlu0 %925, %v918
          %v927 = vpop.permute.xlu0 %926
          %v929 = vmul.f32 %v909, %v922
          %v930 = vmul.f32 %v910, %v927
          %v931 = vld [vmem:[#allocation4] sm:$0xff]
          %v932 = vld [vmem:[#allocation4 + $0x8] sm:$0xff]
          %v933 = vld [vmem:[#allocation4 + $0x10] sm:$0xff]
          %v934 = vld [vmem:[#allocation4 + $0x18] sm:$0xff]
          %v936 = vsel %vm610, %v929, 0
          %v939 = vsel %vm610, %v930, 0
          %v942 = vsel %vm610, %v931, 0
          %v945 = vsel %vm610, %v932, 0
          %947 = vmatprep.subr.mxu0 0.0
          %948 = vmatpush1.xpose.msra.mxu0 %v942
          %949 = vmatprep.subr.mxu0 0.0
          %950 = vmatpush1.xpose.msra.mxu0 %v945
          %951 = vmatprep.subr.mxu0 0.0
          %952 = vmatpush1.xpose.msra.mxu0 0.0
          %953 = vmatprep.subr.mxu0 0.0
          %954 = vmatpush1.xpose.msra.mxu0 0.0
          %955 = vmatprep.subr.mxu0 0.0
          %956 = vmatpush1.xpose.msra.mxu0 0.0
          %957 = vmatprep.subr.mxu0 0.0
          %958 = vmatpush1.xpose.msra.mxu0 0.0
          %959 = vmatprep.subr.mxu0 0.0
          %960 = vmatpush1.xpose.msra.mxu0 0.0
          %961 = vmatprep.subr.mxu0 0.0
          %962 = vmatpush1.xpose.msra.mxu0 0.0
          %963 = vmatprep.subr.mxu0 0.0
          %964 = vmatpush1.xpose.msra.mxu0 0.0
          %965 = vmatprep.subr.mxu0 0.0
          %966 = vmatpush1.xpose.msra.mxu0 0.0
          %967 = vmatprep.subr.mxu0 0.0
          %968 = vmatpush1.xpose.msra.mxu0 0.0
          %969 = vmatprep.subr.mxu0 0.0
          %970 = vmatpush1.xpose.msra.mxu0 0.0
          %971 = vmatprep.subr.mxu0 0.0
          %972 = vmatpush1.xpose.msra.mxu0 0.0
          %973 = vmatprep.subr.mxu0 0.0
          %974 = vmatpush1.xpose.msra.mxu0 0.0
          %975 = vmatprep.subr.mxu0 0.0
          %976 = vmatpush1.xpose.msra.mxu0 0.0
          %977 = vmatprep.subr.mxu0 0.0
          %978 = vmatpush1.xpose.msra.mxu0 0.0
          %979 = vmatprep.subr.mxu0 0.0
          %980 = vmatpush1.xpose.msra.mxu0 0.0
          %981 = vmatprep.subr.mxu0 0.0
          %982 = vmatpush1.xpose.msra.mxu0 0.0
          %983 = vmatprep.subr.mxu0 0.0
          %984 = vmatpush1.xpose.msra.mxu0 0.0
          %985 = vmatprep.subr.mxu0 0.0
          %986 = vmatpush1.xpose.msra.mxu0 0.0
          %987 = vmatprep.subr.mxu0 0.0
          %988 = vmatpush1.xpose.msra.mxu0 0.0
          %989 = vmatprep.subr.mxu0 0.0
          %990 = vmatpush1.xpose.msra.mxu0 0.0
          %991 = vmatprep.subr.mxu0 0.0
          %992 = vmatpush1.xpose.msra.mxu0 0.0
          %993 = vmatprep.subr.mxu0 0.0
          %994 = vmatpush1.xpose.msra.mxu0 0.0
          %995 = vmatprep.subr.mxu0 0.0
          %996 = vmatpush1.xpose.msra.mxu0 0.0
          %997 = vmatprep.subr.mxu0 0.0
          %998 = vmatpush1.xpose.msra.mxu0 0.0
          %999 = vmatprep.subr.mxu0 0.0
          %1000 = vmatpush1.xpose.msra.mxu0 0.0
          %1001 = vmatprep.subr.mxu0 0.0
          %1002 = vmatpush1.xpose.msra.mxu0 0.0
          %1003 = vmatprep.subr.mxu0 0.0
          %1004 = vmatpush1.xpose.msra.mxu0 0.0
          %1005 = vmatprep.subr.mxu0 0.0
          %1006 = vmatpush1.xpose.msra.mxu0 0.0
          %1007 = vmatprep.subr.mxu0 0.0
          %1008 = vmatpush1.xpose.msra.mxu0 0.0
          %1009 = vmatprep.subr.mxu0 0.0
          %1010 = vmatpush1.xpose.msra.mxu0 0.0
          %1011 = vmatprep.mubr.f32.mxu0 0.0
          %1012 = vmatmul.mubr.f32.gmra.mrb[0].mxu0 %v936
          %v1013 = vpop.f32.mrb[0].mxu0
          %v1014 = vadd.f32 0.0, %v1013
          %v1015 = vpop.f32.mrb[0].mxu0
          %1016 = vmatprep.mubr.f32.mxu0 0.0
          %1017 = vmatmul.mubr.f32.gmra.mrb[0].mxu0 %v939
          %v1018 = vpop.f32.mrb[0].mxu0
          %v1019 = vadd.f32 0.0, %v1018
          %v1020 = vpop.f32.mrb[0].mxu0
          %1021 = vdwg.mxu0
          %vm1022 = vcmask 130048
          %1023 = vst.msk [vmem:[%s423] sm:$0xff] %vm1022, %v1014
          %1024 = vst.msk [vmem:[%s423 + $0x8] sm:$0xff] %vm1022, %v1019
          %v1026 = vsel %vm610, %v933, 0
          %v1029 = vsel %vm610, %v934, 0
          %1031 = vmatprep.subr.mxu0 0.0
          %1032 = vmatpush1.xpose.msra.mxu0 %v1026
          %1033 = vmatprep.subr.mxu0 0.0
          %1034 = vmatpush1.xpose.msra.mxu0 %v1029
          %1035 = vmatprep.subr.mxu0 0.0
          %1036 = vmatpush1.xpose.msra.mxu0 0.0
          %1037 = vmatprep.subr.mxu0 0.0
          %1038 = vmatpush1.xpose.msra.mxu0 0.0
          %1039 = vmatprep.subr.mxu0 0.0
          %1040 = vmatpush1.xpose.msra.mxu0 0.0
          %1041 = vmatprep.subr.mxu0 0.0
          %1042 = vmatpush1.xpose.msra.mxu0 0.0
          %1043 = vmatprep.subr.mxu0 0.0
          %1044 = vmatpush1.xpose.msra.mxu0 0.0
          %1045 = vmatprep.subr.mxu0 0.0
          %1046 = vmatpush1.xpose.msra.mxu0 0.0
          %1047 = vmatprep.subr.mxu0 0.0
          %1048 = vmatpush1.xpose.msra.mxu0 0.0
          %1049 = vmatprep.subr.mxu0 0.0
          %1050 = vmatpush1.xpose.msra.mxu0 0.0
          %1051 = vmatprep.subr.mxu0 0.0
          %1052 = vmatpush1.xpose.msra.mxu0 0.0
          %1053 = vmatprep.subr.mxu0 0.0
          %1054 = vmatpush1.xpose.msra.mxu0 0.0
          %1055 = vmatprep.subr.mxu0 0.0
          %1056 = vmatpush1.xpose.msra.mxu0 0.0
          %1057 = vmatprep.subr.mxu0 0.0
          %1058 = vmatpush1.xpose.msra.mxu0 0.0
          %1059 = vmatprep.subr.mxu0 0.0
          %1060 = vmatpush1.xpose.msra.mxu0 0.0
          %1061 = vmatprep.subr.mxu0 0.0
          %1062 = vmatpush1.xpose.msra.mxu0 0.0
          %1063 = vmatprep.subr.mxu0 0.0
          %1064 = vmatpush1.xpose.msra.mxu0 0.0
          %1065 = vmatprep.subr.mxu0 0.0
          %1066 = vmatpush1.xpose.msra.mxu0 0.0
          %1067 = vmatprep.subr.mxu0 0.0
          %1068 = vmatpush1.xpose.msra.mxu0 0.0
          %1069 = vmatprep.subr.mxu0 0.0
          %1070 = vmatpush1.xpose.msra.mxu0 0.0
          %1071 = vmatprep.subr.mxu0 0.0
          %1072 = vmatpush1.xpose.msra.mxu0 0.0
          %1073 = vmatprep.subr.mxu0 0.0
          %1074 = vmatpush1.xpose.msra.mxu0 0.0
          %1075 = vmatprep.subr.mxu0 0.0
          %1076 = vmatpush1.xpose.msra.mxu0 0.0
          %1077 = vmatprep.subr.mxu0 0.0
          %1078 = vmatpush1.xpose.msra.mxu0 0.0
          %1079 = vmatprep.subr.mxu0 0.0
          %1080 = vmatpush1.xpose.msra.mxu0 0.0
          %1081 = vmatprep.subr.mxu0 0.0
          %1082 = vmatpush1.xpose.msra.mxu0 0.0
          %1083 = vmatprep.subr.mxu0 0.0
          %1084 = vmatpush1.xpose.msra.mxu0 0.0
          %1085 = vmatprep.subr.mxu0 0.0
          %1086 = vmatpush1.xpose.msra.mxu0 0.0
          %1087 = vmatprep.subr.mxu0 0.0
          %1088 = vmatpush1.xpose.msra.mxu0 0.0
          %1089 = vmatprep.subr.mxu0 0.0
          %1090 = vmatpush1.xpose.msra.mxu0 0.0
          %1091 = vmatprep.subr.mxu0 0.0
          %1092 = vmatpush1.xpose.msra.mxu0 0.0
          %1093 = vmatprep.subr.mxu0 0.0
          %1094 = vmatpush1.xpose.msra.mxu0 0.0
          %1095 = vmatprep.mubr.f32.mxu0 0.0
          %1096 = vmatmul.mubr.f32.gmra.mrb[0].mxu0 %v936
          %v1097 = vpop.f32.mrb[0].mxu0
          %v1098 = vadd.f32 0.0, %v1097
          %v1099 = vpop.f32.mrb[0].mxu0
          %1100 = vmatprep.mubr.f32.mxu0 0.0
          %1101 = vmatmul.mubr.f32.gmra.mrb[0].mxu0 %v939
          %v1102 = vpop.f32.mrb[0].mxu0
          %v1103 = vadd.f32 0.0, %v1102
          %v1104 = vpop.f32.mrb[0].mxu0
          %1105 = vdwg.mxu0
          %s1106 = scalar_lea.vmem %s423, 16 [#allocation11]
          %1107 = vst.msk [vmem:[%s1106] sm:$0xff] %vm1022, %v1098
          %1108 = vst.msk [vmem:[%s1106 + $0x8] sm:$0xff] %vm1022, %v1103
        $region56: #{tpu_custom_call.1} parent=43 // pred_fallthru
          _
        %s1109 = sand.u32 %s193, 1
        %s1110 = scalar_lea.sflag [#allocation6], %s1109
        %s1111 = sand.u32 %s193, 1
        %s1112 = smul.addr %s1111, 64
        %s1113 = scalar_lea.vmem [#allocation7], %s1112
        %s1114 = sand.u32 %s31, 1
        %s1115 = scalar_lea.sflag [#allocation9], %s1114
        %s1116 = sand.u32 %s221, 1
        %s1117 = smul.addr %s1116, 64
        %s1118 = scalar_lea.vmem [#allocation8], %s1117
        %s1119 = sand.u32 %s31, 1
        %s1120 = scalar_lea.sflag [#allocation9], %s1119
        %s1121 = sand.u32 %s249, 1
        %s1122 = smul.addr %s1121, 64
        %s1123 = scalar_lea.vmem [#allocation10], %s1122
        %s1124 = sand.u32 %s275, 1
        %s1125 = scalar_lea.sflag [#allocation12], %s1124
        %s1126 = sand.u32 %s275, 1
        %s1127 = smul.addr %s1126, 32
        %s1128 = scalar_lea.vmem [#allocation11], %s1127
        // Predicated region
        $region57: #{tpu_custom_call.1} parent=43 // pred_check
          %p1129 = pneg %p203
        $region58: #{tpu_custom_call.1} parent=43 // pred_check_branch
          %1131 = sbr.rel (%p1129) target = $region60
        $region59: #{tpu_custom_call.1} parent=43 // pred_region
          %s1132 = smul.u32 2, %s36
          %s1134 = ssub.s32 1024, 1024
          %1135 = vsyncadd %s1110, %s1134
          %s1136 = smul.addr %s35, 8
          %s1137 = sadd.s32 %s1132, %s1136
          %s1138 = smul.addr %s1137, 128
          %s1139 = scalar_lea.hbm %s6, %s1138
          %s1140 = sshll.u32 %s1113, 4
          %s1141 = int_to_ptr.vmem [resolvable:$true] %s1140
          %1146 = dma.vmem_to_hbm [thread:$0]  %s1141, 1024, %s1139, %s1110, 256, 256, 16
        $region60: #{tpu_custom_call.1} parent=43 // pred_fallthru
          _
        // Predicated region
        $region61: #{tpu_custom_call.1} parent=43 // pred_check
          %p1147 = pneg %p231
        $region62: #{tpu_custom_call.1} parent=43 // pred_check_branch
          %1149 = sbr.rel (%p1147) target = $region64
        $region63: #{tpu_custom_call.1} parent=43 // pred_region
          %s1150 = smul.u32 2, %s36
          %s1152 = ssub.s32 1024, 1024
          %1153 = vsyncadd %s1115, %s1152
          %s1154 = smul.addr %s35, 8
          %s1155 = sadd.s32 %s1150, %s1154
          %s1156 = smul.addr %s1155, 128
          %s1157 = scalar_lea.hbm %s7, %s1156
          %s1158 = sshll.u32 %s1118, 4
          %s1159 = int_to_ptr.vmem [resolvable:$true] %s1158
          %1164 = dma.vmem_to_hbm [thread:$0]  %s1159, 1024, %s1157, %s1115, 256, 256, 16
        $region64: #{tpu_custom_call.1} parent=43 // pred_fallthru
          _
        // Predicated region
        $region65: #{tpu_custom_call.1} parent=43 // pred_check
          %p1165 = pneg %p259
        $region66: #{tpu_custom_call.1} parent=43 // pred_check_branch
          %1167 = sbr.rel (%p1165) target = $region68
        $region67: #{tpu_custom_call.1} parent=43 // pred_region
          %s1168 = smul.u32 2, %s36
          %s1170 = ssub.s32 1024, 1024
          %1171 = vsyncadd %s1120, %s1170
          %s1172 = smul.addr %s35, 8
          %s1173 = sadd.s32 %s1168, %s1172
          %s1174 = smul.addr %s1173, 128
          %s1175 = scalar_lea.hbm %s8, %s1174
          %s1176 = sshll.u32 %s1123, 4
          %s1177 = int_to_ptr.vmem [resolvable:$true] %s1176
          %1182 = dma.vmem_to_hbm [thread:$0]  %s1177, 1024, %s1175, %s1120, 256, 256, 16
        $region68: #{tpu_custom_call.1} parent=43 // pred_fallthru
          _
        // Predicated region
        $region69: #{tpu_custom_call.1} parent=43 // pred_check
          %p1183 = pneg %p285
        $region70: #{tpu_custom_call.1} parent=43 // pred_check_branch
          %1185 = sbr.rel (%p1183) target = $region72
        $region71: #{tpu_custom_call.1} parent=43 // pred_region
          %s1187 = ssub.s32 512, 512
          %1188 = vsyncadd %s1125, %s1187
          %s1189 = smul.addr %s35, 4
          %s1190 = smul.addr %s1189, 128
          %s1191 = scalar_lea.hbm %s9, %s1190
          %s1192 = sshll.u32 %s1128, 4
          %s1193 = int_to_ptr.vmem [resolvable:$true] %s1192
          %1198 = dma.vmem_to_hbm [thread:$0]  %s1193, 512, %s1191, %s1125, 128, 128, 8
        $region72: #{tpu_custom_call.1} parent=43 // pred_fallthru
          _
      $region44: #{tpu_custom_call.1} parent=5 // pred_fallthru
        _
      %p1199 = scmp.le.s32.totalorder 2, %s26
      // Predicated region
      $region73: #{tpu_custom_call.1} parent=5 // pred_check
        %p1200 = pneg %p1199
      $region74: #{tpu_custom_call.1} parent=5 // pred_check_branch
        %1202 = sbr.rel (%p1200) target = $region76
      $region75: #{tpu_custom_call.1} parent=5 // pred_region
        %s1203 = ssub.s32 %s26, 2
        // Predicated region
        $region77: #{tpu_custom_call.1} parent=75 // pred_check
          %p1204 = pneg %p209
        $region78: #{tpu_custom_call.1} parent=75 // pred_check_branch
          %1206 = sbr.rel (%p1204) target = $region80
        $region79: #{tpu_custom_call.1} parent=75 // pred_region
          %s1207 = sand.u32 %s194, 1
          %s1208 = scalar_lea.sflag [#allocation6], %s1207
          %s1209 = sand.u32 %s194, 1
          %s1210 = smul.addr %s1209, 64
          %s1211 = scalar_lea.vmem [#allocation7], %s1210
          %1212 = dma.done %s1208, 1024
        $region80: #{tpu_custom_call.1} parent=75 // pred_fallthru
          _
        // Predicated region
        $region81: #{tpu_custom_call.1} parent=75 // pred_check
          %p1213 = pneg %p237
        $region82: #{tpu_custom_call.1} parent=75 // pred_check_branch
          %1215 = sbr.rel (%p1213) target = $region84
        $region83: #{tpu_custom_call.1} parent=75 // pred_region
          %s1216 = sand.u32 %s32, 1
          %s1217 = scalar_lea.sflag [#allocation9], %s1216
          %s1218 = sand.u32 %s222, 1
          %s1219 = smul.addr %s1218, 64
          %s1220 = scalar_lea.vmem [#allocation8], %s1219
          %1221 = dma.done %s1217, 1024
        $region84: #{tpu_custom_call.1} parent=75 // pred_fallthru
          _
        // Predicated region
        $region85: #{tpu_custom_call.1} parent=75 // pred_check
          %p1222 = pneg %p265
        $region86: #{tpu_custom_call.1} parent=75 // pred_check_branch
          %1224 = sbr.rel (%p1222) target = $region88
        $region87: #{tpu_custom_call.1} parent=75 // pred_region
          %s1225 = sand.u32 %s32, 1
          %s1226 = scalar_lea.sflag [#allocation9], %s1225
          %s1227 = sand.u32 %s250, 1
          %s1228 = smul.addr %s1227, 64
          %s1229 = scalar_lea.vmem [#allocation10], %s1228
          %1230 = dma.done %s1226, 1024
        $region88: #{tpu_custom_call.1} parent=75 // pred_fallthru
          _
        // Predicated region
        $region89: #{tpu_custom_call.1} parent=75 // pred_check
          %p1231 = pneg %p291
        $region90: #{tpu_custom_call.1} parent=75 // pred_check_branch
          %1233 = sbr.rel (%p1231) target = $region92
        $region91: #{tpu_custom_call.1} parent=75 // pred_region
          %s1234 = sand.u32 %s276, 1
          %s1235 = scalar_lea.sflag [#allocation12], %s1234
          %s1236 = sand.u32 %s276, 1
          %s1237 = smul.addr %s1236, 32
          %s1238 = scalar_lea.vmem [#allocation11], %s1237
          %1239 = dma.done %s1235, 512
        $region92: #{tpu_custom_call.1} parent=75 // pred_fallthru
          _
      $region76: #{tpu_custom_call.1} parent=5 // pred_fallthru
        _
    $region6: #{tpu_custom_call.1} parent=1 // loop_footer
      %s30 = sadd.s32 1, %s26
    $region7: #{tpu_custom_call.1} parent=1 // loop_footer_branch
      %25 = sbr.rel target = $region3
    $region8: #{tpu_custom_call.1} parent=1 // loop_exit
      _
    %1240 = vsyncpa [#allocation5], 1
    %s1241 = scalar_lea.sflag [#allocation5], 1
    %1242 = vsyncpa %s1241, 1
    %1243 = vsyncpa [#allocation6], 1
    %s1244 = scalar_lea.sflag [#allocation6], 1
    %1245 = vsyncpa %s1244, 1
    %1246 = vsyncpa [#allocation9], 1
    %s1247 = scalar_lea.sflag [#allocation9], 1
    %1248 = vsyncpa %s1247, 1
    %1249 = vsyncpa [#allocation12], 1
    %s1250 = scalar_lea.sflag [#allocation12], 1
    %1251 = vsyncpa %s1250, 1

</llo_original>
